<compile_context>
chip_gen: v6e
topology: v6e:2x2x1
jax: 0.10.0
libtpu: 0.0.40
codegen_flags: <defaults>
</compile_context>

<pallas_src>
import math
import functools

import jax
import jax.numpy as jnp
from jax import lax
from jax.experimental import pallas as pl
from jax.experimental.pallas import tpu as pltpu


def _pick_tile(dim, candidates):
    """Largest candidate that evenly divides `dim`, else the full dim (always legal)."""
    for c in candidates:
        if dim >= c and dim % c == 0:
            return c
    return dim


# ----------------------------------------------------------------------------
# Kernel 1: tiled linear  y = x @ W_t + b     (W_t already transposed: (in, out))
# ----------------------------------------------------------------------------
def linear_kernel(x_ref, w_ref, b_ref, o_ref, acc_ref):
    k = pl.program_id(2)

    @pl.when(k == 0)
    def _():
        acc_ref[...] = jnp.zeros(acc_ref.shape, jnp.float32)

    acc_ref[...] += jnp.dot(x_ref[...], w_ref[...],
                            preferred_element_type=jnp.float32)

    @pl.when(k == pl.num_programs(2) - 1)
    def _():
        o_ref[...] = (acc_ref[...] + b_ref[...]).astype(o_ref.dtype)


def linear(x, w_t, b2, out_dtype):
    """x: (M, Din) bf16, w_t: (Din, Dout) bf16, b2: (1, Dout) f32 -> (M, Dout)."""
    M, Din = x.shape
    Dout = w_t.shape[1]
    tm = _pick_tile(M, (256, 128, 64, 32, 16, 8))
    tn = _pick_tile(Dout, (512, 256, 128))   # prefer 256-multiples for v6e/v7x MXU
    tk = _pick_tile(Din, (512, 256, 128))
    grid = (M // tm, Dout // tn, Din // tk)
    return pl.pallas_call(
        linear_kernel,
        out_shape=jax.ShapeDtypeStruct((M, Dout), out_dtype),
        grid_spec=pltpu.PrefetchScalarGridSpec(
            num_scalar_prefetch=0,
            grid=grid,
            in_specs=[
                pl.BlockSpec((tm, tk), lambda i, j, k: (i, k)),
                pl.BlockSpec((tk, tn), lambda i, j, k: (k, j)),
                pl.BlockSpec((1, tn), lambda i, j, k: (0, j)),
            ],
            out_specs=pl.BlockSpec((tm, tn), lambda i, j, k: (i, j)),
            scratch_shapes=[pltpu.VMEM((tm, tn), jnp.float32)],
        ),
        compiler_params=pltpu.CompilerParams(
            dimension_semantics=("parallel", "parallel", "arbitrary"),
            vmem_limit_bytes=32 * 1024 * 1024,
        ),
    )(x, w_t, b2)


# ----------------------------------------------------------------------------
# Kernel 2: flash-style multi-head attention on the (B, S, H*d_k) slab layout
# ----------------------------------------------------------------------------
def mha_attention_kernel(q_ref, k_ref, v_ref, bias_ref, o_ref,
                         m_sc, l_sc, acc_sc, *, num_heads, d_k):
    kv = pl.program_id(2)

    @pl.when(kv == 0)
    def _():
        m_sc[...] = jnp.full(m_sc.shape, -jnp.inf, dtype=jnp.float32)
        l_sc[...] = jnp.zeros(l_sc.shape, jnp.float32)
        acc_sc[...] = jnp.zeros(acc_sc.shape, jnp.float32)

    bias = bias_ref[0]                           # (1, tkv) additive mask (0 / -1e9)

    for h in range(num_heads):                   # static unroll over heads
        lo = h * d_k
        q = q_ref[0, :, lo:lo + d_k]             # (tq, d_k) bf16 (1/sqrt(d_k) pre-folded)
        k = k_ref[0, :, lo:lo + d_k]             # (tkv, d_k) bf16
        v = v_ref[0, :, lo:lo + d_k]             # (tkv, d_k) bf16

        # q @ k^T without materializing a transpose: contract on d_k of both.
        s = lax.dot_general(q, k, (((1,), (1,)), ((), ())),
                            preferred_element_type=jnp.float32)   # (tq, tkv)
        s = s + bias                                              # broadcast over rows

        m_prev = m_sc[:, h:h + 1]                                 # (tq, 1)
        m_new = jnp.maximum(m_prev, jnp.max(s, axis=-1, keepdims=True))
        alpha = jnp.exp(m_prev - m_new)                           # (tq, 1)
        p = jnp.exp(s - m_new)                                    # (tq, tkv)

        l_sc[:, lo:lo + d_k] = (alpha * l_sc[:, lo:lo + d_k]
                                + jnp.sum(p, axis=-1, keepdims=True))
        acc_sc[:, lo:lo + d_k] = (alpha * acc_sc[:, lo:lo + d_k]
                                  + jnp.dot(p.astype(v.dtype), v,
                                            preferred_element_type=jnp.float32))
        m_sc[:, h:h + 1] = m_new

    @pl.when(kv == pl.num_programs(2) - 1)
    def _():
        # l_sc is replicated across each head's d_k columns -> one lane-dense store.
        inv_l = pl.reciprocal(l_sc[...], approx=True)
        o_ref[0] = (acc_sc[...] * inv_l).astype(o_ref.dtype)


def mha_attention(q, k, v, mask_bias, *, num_heads):
    """q,k,v: (B, S, H*d_k) bf16; mask_bias: (B, 1, S) f32 additive -> (B, S, H*d_k)."""
    B, S, D = q.shape
    d_k = D // num_heads
    tq = _pick_tile(S, (256, 128))
    tkv = _pick_tile(S, (512, 256, 128))
    kern = functools.partial(mha_attention_kernel, num_heads=num_heads, d_k=d_k)
    return pl.pallas_call(
        kern,
        out_shape=jax.ShapeDtypeStruct((B, S, D), q.dtype),
        grid_spec=pltpu.PrefetchScalarGridSpec(
            num_scalar_prefetch=0,
            grid=(B, S // tq, S // tkv),
            in_specs=[
                pl.BlockSpec((1, tq, D), lambda b, qi, ki: (b, qi, 0)),
                pl.BlockSpec((1, tkv, D), lambda b, qi, ki: (b, ki, 0)),
                pl.BlockSpec((1, tkv, D), lambda b, qi, ki: (b, ki, 0)),
                pl.BlockSpec((1, 1, tkv), lambda b, qi, ki: (b, 0, ki)),
            ],
            out_specs=pl.BlockSpec((1, tq, D), lambda b, qi, ki: (b, qi, 0)),
            scratch_shapes=[
                pltpu.VMEM((tq, num_heads), jnp.float32),  # running max per head
                pltpu.VMEM((tq, D), jnp.float32),          # running denom (replicated/head)
                pltpu.VMEM((tq, D), jnp.float32),          # un-normalized output acc
            ],
        ),
        compiler_params=pltpu.CompilerParams(
            dimension_semantics=("parallel", "parallel", "arbitrary"),
            vmem_limit_bytes=32 * 1024 * 1024,
        ),
    )(q, k, v, mask_bias)


# ----------------------------------------------------------------------------
# Full MultiHeadedAttention forward (glue in plain JAX, hot paths in Pallas)
# ----------------------------------------------------------------------------
def prepare_params(params, h):
    """One-time prep: transpose to (in,out), fold 1/sqrt(d_k) into the Q projection,
    cast weights to bf16, reshape biases to (1, D)."""
    d_model = params["w0"].shape[0]
    d_k = d_model // h
    scale = 1.0 / math.sqrt(d_k)
    prep = {}
    for i in range(4):
        w_t = params[f"w{i}"].T.astype(jnp.float32)
        b = params[f"b{i}"].astype(jnp.float32)
        if i == 0:                      # scores = (qW0^T+b0)(kW1^T+b1)^T / sqrt(d_k)
            w_t = w_t * scale           # -> fold the scale into the query projection
            b = b * scale
        prep[f"wt{i}"] = w_t.astype(jnp.bfloat16)
        prep[f"b{i}"] = b.reshape(1, -1)
    return prep


@functools.partial(jax.jit, static_argnames=("h",))
def multi_headed_attention(prepared, query, key, value, mask, *, h):
    B, S, d_model = query.shape
    assert d_model % h == 0

    # additive mask bias computed once (0 where attend, -1e9 where masked)
    mask_bias = jnp.where(mask == 0, jnp.float32(-1000000000.0),
                          jnp.float32(0.0)).reshape(B, 1, S)

    def proj(x, i):
        # In production the activations would already be bf16; cast here once.
        xb = x.reshape(B * S, d_model).astype(jnp.bfloat16)
        y = linear(xb, prepared[f"wt{i}"], prepared[f"b{i}"], out_dtype=jnp.bfloat16)
        return y.reshape(B, S, d_model)        # (B, S, H*d_k) slab -- no transpose

    q = proj(query, 0)
    k = proj(key, 1)
    v = proj(value, 2)

    ctx = mha_attention(q, k, v, mask_bias, num_heads=h)        # (B, S, H*d_k) bf16

    out = linear(ctx.reshape(B * S, d_model), prepared["wt3"], prepared["b3"],
                 out_dtype=jnp.float32)
    return out.reshape(B, S, d_model)


def init_params(key, d_model):
    """Deterministic nn.Linear-style init for 4 (d_model, d_model) linears (out, in)."""
    params = {}
    bound = 1.0 / math.sqrt(d_model)
    for i in range(4):
        key, kw, kb = jax.random.split(key, 3)
        params[f"w{i}"] = jax.random.uniform(
            kw, (d_model, d_model), jnp.float32, -bound, bound)   # (out, in)
        params[f"b{i}"] = jax.random.uniform(
            kb, (d_model,), jnp.float32, -bound, bound)
    return params


# ----------------------------------------------------------------------------
# Pure-JAX f32 reference for verification (PyTorch semantics)
# ----------------------------------------------------------------------------
def reference(params, query, key, value, mask, *, h):
    B, S, d_model = query.shape
    d_k = d_model // h

    def proj(x, i):
        y = x @ params[f"w{i}"].T + params[f"b{i}"]
        return y.reshape(B, S, h, d_k).transpose(0, 2, 1, 3)

    q, k, v = proj(query, 0), proj(key, 1), proj(value, 2)
    scores = jnp.einsum("bhqd,bhkd->bhqk", q, k) / math.sqrt(d_k)
    scores = jnp.where(mask[:, None, None, :] == 0, -1000000000.0, scores)
    p = jax.nn.softmax(scores, axis=-1)
    x = jnp.einsum("bhqk,bhkd->bhqd", p, v)
    x = x.transpose(0, 2, 1, 3).reshape(B, S, d_model)
    return x @ params["w3"].T + params["b3"]


if __name__ == "__main__":
    B, S, d_model, h = 2, 8, 32, 4

    key = jax.random.PRNGKey(0)
    key, kq, kk, kv = jax.random.split(key, 4)
    query = jax.random.normal(kq, (B, S, d_model), jnp.float32)
    key_in = jax.random.normal(kk, (B, S, d_model), jnp.float32)
    value = jax.random.normal(kv, (B, S, d_model), jnp.float32)

    # padding-style mask: last two key positions of batch 1 masked out
    mask = jnp.ones((B, S), jnp.float32).at[1, -2:].set(0.0)

    params = init_params(jax.random.PRNGKey(42), d_model)
    prepared = prepare_params(params, h)   # one-time transpose + scale-fold + bf16 cast

    out = multi_headed_attention(prepared, query, key_in, value, mask, h=h)
    out = jax.block_until_ready(out)

    ref = reference(params, query, key_in, value, mask, h=h)
    assert out.shape == (B, S, d_model)
    # bf16 MXU inputs + approx reciprocal -> looser tolerance than the pure-f32 path.
    assert jnp.allclose(out, ref, atol=5e-2, rtol=5e-2), "mismatch vs reference"

    print("KERNEL_OK")
</pallas_src>

<mosaic_0001>
module attributes {stable_mosaic.version = 11 : i64} {
  func.func @linear_kernel(%arg0: i32, %arg1: i32, %arg2: i32, %arg3: memref<16x32xbf16, #tpu.memory_space<vmem>>, %arg4: memref<32x32xbf16, #tpu.memory_space<vmem>>, %arg5: memref<1x32xf32, #tpu.memory_space<vmem>>, %arg6: memref<16x32xbf16, #tpu.memory_space<vmem>>, %arg7: memref<16x32xf32, #tpu.memory_space<vmem>>) attributes {dimension_semantics = [#tpu.dimension_semantics<parallel>, #tpu.dimension_semantics<parallel>, #tpu.dimension_semantics<arbitrary>], iteration_bounds = array<i64: 1, 1, 1>, scalar_prefetch = 0 : i64, scratch_operands = 1 : i64, tpu.core_type = #tpu.core_type<tc>, window_params = [{transform_indices = @transform_0, window_bounds = array<i64: 16, 32>}, {transform_indices = @transform_1, window_bounds = array<i64: 32, 32>}, {transform_indices = @transform_2, window_bounds = array<i64: 1, 32>}, {transform_indices = @transform_3, window_bounds = array<i64: 16, 32>}]} {
    %c0_i32 = arith.constant 0 : i32
    %0 = arith.cmpi eq, %arg2, %c0_i32 : i32
    %1 = arith.extui %0 : i1 to i32
    %c0_i32_0 = arith.constant 0 : i32
    %2 = arith.cmpi ne, %1, %c0_i32_0 : i32
    scf.if %2 {
      %cst_10 = arith.constant 0.000000e+00 : f32
      %12 = vector.broadcast %cst_10 : f32 to vector<16x32xf32>
      %c0_11 = arith.constant 0 : index
      %c0_12 = arith.constant 0 : index
      %13 = vector.load %arg7[%c0_11, %c0_12] : memref<16x32xf32, #tpu.memory_space<vmem>>, vector<16x32xf32>
      tpu.vector_store %arg7[%c0_11, %c0_12], %12 {strides = array<i32>} : memref<16x32xf32, #tpu.memory_space<vmem>>, vector<16x32xf32>,
    } else {
    }
    %c0 = arith.constant 0 : index
    %c0_1 = arith.constant 0 : index
    %3 = vector.load %arg7[%c0, %c0_1] : memref<16x32xf32, #tpu.memory_space<vmem>>, vector<16x32xf32>
    %c0_2 = arith.constant 0 : index
    %c0_3 = arith.constant 0 : index
    %4 = vector.load %arg3[%c0_2, %c0_3] : memref<16x32xbf16, #tpu.memory_space<vmem>>, vector<16x32xbf16>
    %c0_4 = arith.constant 0 : index
    %c0_5 = arith.constant 0 : index
    %5 = vector.load %arg4[%c0_4, %c0_5] : memref<32x32xbf16, #tpu.memory_space<vmem>>, vector<32x32xbf16>
    %cst = arith.constant dense<0.000000e+00> : vector<16x32xf32>
    %6 = tpu.matmul %4, %5, %cst {dimension_numbers = #tpu.dot_dimension_numbers<[1], [0], [0], [1], [0, 0, 1, 1], [], []>} : vector<16x32xbf16>, vector<32x32xbf16>, vector<16x32xf32> -> vector<16x32xf32>
    %7 = arith.addf %3, %6 : vector<16x32xf32>
    %c0_6 = arith.constant 0 : index
    %c0_7 = arith.constant 0 : index
    %8 = vector.load %arg7[%c0_6, %c0_7] : memref<16x32xf32, #tpu.memory_space<vmem>>, vector<16x32xf32>
    tpu.vector_store %arg7[%c0_6, %c0_7], %7 {strides = array<i32>} : memref<16x32xf32, #tpu.memory_space<vmem>>, vector<16x32xf32>,
    %c0_i32_8 = arith.constant 0 : i32
    %9 = arith.cmpi eq, %arg2, %c0_i32_8 : i32
    %10 = arith.extui %9 : i1 to i32
    %c0_i32_9 = arith.constant 0 : i32
    %11 = arith.cmpi ne, %10, %c0_i32_9 : i32
    scf.if %11 {
      %c0_10 = arith.constant 0 : index
      %c0_11 = arith.constant 0 : index
      %12 = vector.load %arg7[%c0_10, %c0_11] : memref<16x32xf32, #tpu.memory_space<vmem>>, vector<16x32xf32>
      %c0_12 = arith.constant 0 : index
      %c0_13 = arith.constant 0 : index
      %13 = vector.load %arg5[%c0_12, %c0_13] : memref<1x32xf32, #tpu.memory_space<vmem>>, vector<1x32xf32>
      %14 = vector.broadcast %13 : vector<1x32xf32> to vector<16x32xf32>
      %15 = arith.addf %12, %14 : vector<16x32xf32>
      %16 = arith.truncf %15 : vector<16x32xf32> to vector<16x32xbf16>
      %c0_14 = arith.constant 0 : index
      %c0_15 = arith.constant 0 : index
      %17 = vector.load %arg6[%c0_14, %c0_15] : memref<16x32xbf16, #tpu.memory_space<vmem>>, vector<16x32xbf16>
      tpu.vector_store %arg6[%c0_14, %c0_15], %16 {strides = array<i32>} : memref<16x32xbf16, #tpu.memory_space<vmem>>, vector<16x32xbf16>,
    } else {
    }
    return
  }
  func.func @transform_0(%arg0: i32, %arg1: i32, %arg2: i32) -> (i32, i32) {
    %c0_i32 = arith.constant 0 : i32
    return %arg0, %arg2 : i32, i32
  }
  func.func @transform_1(%arg0: i32, %arg1: i32, %arg2: i32) -> (i32, i32) {
    %c0_i32 = arith.constant 0 : i32
    return %arg2, %arg1 : i32, i32
  }
  func.func @transform_2(%arg0: i32, %arg1: i32, %arg2: i32) -> (i32, i32) {
    %c0_i32 = arith.constant 0 : i32
    %c0_i32_0 = arith.constant 0 : i32
    return %c0_i32, %arg1 : i32, i32
  }
  func.func @transform_3(%arg0: i32, %arg1: i32, %arg2: i32) -> (i32, i32) {
    %c0_i32 = arith.constant 0 : i32
    return %arg0, %arg1 : i32, i32
  }
}

module attributes {stable_mosaic.version = 11 : i64} {
  func.func @mha_attention_kernel(%arg0: i32, %arg1: i32, %arg2: i32, %arg3: memref<1x8x32xbf16, #tpu.memory_space<vmem>>, %arg4: memref<1x8x32xbf16, #tpu.memory_space<vmem>>, %arg5: memref<1x8x32xbf16, #tpu.memory_space<vmem>>, %arg6: memref<1x1x8xf32, #tpu.memory_space<vmem>>, %arg7: memref<1x8x32xbf16, #tpu.memory_space<vmem>>, %arg8: memref<8x4xf32, #tpu.memory_space<vmem>>, %arg9: memref<8x32xf32, #tpu.memory_space<vmem>>, %arg10: memref<8x32xf32, #tpu.memory_space<vmem>>) attributes {dimension_semantics = [#tpu.dimension_semantics<parallel>, #tpu.dimension_semantics<parallel>, #tpu.dimension_semantics<arbitrary>], iteration_bounds = array<i64: 2, 1, 1>, scalar_prefetch = 0 : i64, scratch_operands = 3 : i64, tpu.core_type = #tpu.core_type<tc>, window_params = [{transform_indices = @transform_0, window_bounds = array<i64: 1, 8, 32>}, {transform_indices = @transform_1, window_bounds = array<i64: 1, 8, 32>}, {transform_indices = @transform_2, window_bounds = array<i64: 1, 8, 32>}, {transform_indices = @transform_3, window_bounds = array<i64: 1, 1, 8>}, {transform_indices = @transform_4, window_bounds = array<i64: 1, 8, 32>}]} {
    %c0_i32 = arith.constant 0 : i32
    %0 = arith.cmpi eq, %arg2, %c0_i32 : i32
    %1 = arith.extui %0 : i1 to i32
    %c0_i32_0 = arith.constant 0 : i32
    %2 = arith.cmpi ne, %1, %c0_i32_0 : i32
    scf.if %2 {
      %cst_98 = arith.constant 0xFF800000 : f32
      %144 = vector.broadcast %cst_98 : f32 to vector<8x4xf32>
      %c0_99 = arith.constant 0 : index
      %c0_100 = arith.constant 0 : index
      %145 = vector.load %arg8[%c0_99, %c0_100] : memref<8x4xf32, #tpu.memory_space<vmem>>, vector<8x4xf32>
      tpu.vector_store %arg8[%c0_99, %c0_100], %144 {strides = array<i32>} : memref<8x4xf32, #tpu.memory_space<vmem>>, vector<8x4xf32>,
      %cst_101 = arith.constant 0.000000e+00 : f32
      %146 = vector.broadcast %cst_101 : f32 to vector<8x32xf32>
      %c0_102 = arith.constant 0 : index
      %c0_103 = arith.constant 0 : index
      %147 = vector.load %arg9[%c0_102, %c0_103] : memref<8x32xf32, #tpu.memory_space<vmem>>, vector<8x32xf32>
      tpu.vector_store %arg9[%c0_102, %c0_103], %146 {strides = array<i32>} : memref<8x32xf32, #tpu.memory_space<vmem>>, vector<8x32xf32>,
      %cst_104 = arith.constant 0.000000e+00 : f32
      %148 = vector.broadcast %cst_104 : f32 to vector<8x32xf32>
      %c0_105 = arith.constant 0 : index
      %c0_106 = arith.constant 0 : index
      %149 = vector.load %arg10[%c0_105, %c0_106] : memref<8x32xf32, #tpu.memory_space<vmem>>, vector<8x32xf32>
      tpu.vector_store %arg10[%c0_105, %c0_106], %148 {strides = array<i32>} : memref<8x32xf32, #tpu.memory_space<vmem>>, vector<8x32xf32>,
    } else {
    }
    %c0 = arith.constant 0 : index
    %c0_1 = arith.constant 0 : index
    %c0_2 = arith.constant 0 : index
    %3 = vector.load %arg6[%c0, %c0_1, %c0_2] : memref<1x1x8xf32, #tpu.memory_space<vmem>>, vector<1x1x8xf32>
    %4 = vector.shape_cast %3 : vector<1x1x8xf32> to vector<1x8xf32>
    %c0_3 = arith.constant 0 : index
    %c0_4 = arith.constant 0 : index
    %c0_5 = arith.constant 0 : index
    %5 = vector.load %arg3[%c0_3, %c0_4, %c0_5] : memref<1x8x32xbf16, #tpu.memory_space<vmem>>, vector<1x8x8xbf16>
    %6 = vector.shape_cast %5 : vector<1x8x8xbf16> to vector<8x8xbf16>
    %c0_6 = arith.constant 0 : index
    %c0_7 = arith.constant 0 : index
    %c0_8 = arith.constant 0 : index
    %7 = vector.load %arg4[%c0_6, %c0_7, %c0_8] : memref<1x8x32xbf16, #tpu.memory_space<vmem>>, vector<1x8x8xbf16>
    %8 = vector.shape_cast %7 : vector<1x8x8xbf16> to vector<8x8xbf16>
    %c0_9 = arith.constant 0 : index
    %c0_10 = arith.constant 0 : index
    %c0_11 = arith.constant 0 : index
    %9 = vector.load %arg5[%c0_9, %c0_10, %c0_11] : memref<1x8x32xbf16, #tpu.memory_space<vmem>>, vector<1x8x8xbf16>
    %10 = vector.shape_cast %9 : vector<1x8x8xbf16> to vector<8x8xbf16>
    %cst = arith.constant dense<0.000000e+00> : vector<8x8xf32>
    %11 = tpu.matmul %6, %8, %cst {dimension_numbers = #tpu.dot_dimension_numbers<[1], [1], [0], [0], [0, 0, 1, 0], [], []>} : vector<8x8xbf16>, vector<8x8xbf16>, vector<8x8xf32> -> vector<8x8xf32>
    %12 = vector.broadcast %4 : vector<1x8xf32> to vector<8x8xf32>
    %13 = arith.addf %11, %12 : vector<8x8xf32>
    %c0_12 = arith.constant 0 : index
    %c0_13 = arith.constant 0 : index
    %14 = vector.load %arg8[%c0_12, %c0_13] : memref<8x4xf32, #tpu.memory_space<vmem>>, vector<8x1xf32>
    %cst_14 = arith.constant dense<0xFF800000> : vector<8xf32>
    %15 = vector.multi_reduction <maximumf>, %13, %cst_14 [1] : vector<8x8xf32> to vector<8xf32>
    %16 = vector.shape_cast %15 : vector<8xf32> to vector<8x1xf32>
    %17 = arith.maximumf %14, %16 : vector<8x1xf32>
    %18 = arith.subf %14, %17 : vector<8x1xf32>
    %19 = math.exp %18 : vector<8x1xf32>
    %20 = vector.broadcast %17 : vector<8x1xf32> to vector<8x8xf32>
    %21 = arith.subf %13, %20 : vector<8x8xf32>
    %22 = math.exp %21 : vector<8x8xf32>
    %c0_15 = arith.constant 0 : index
    %c0_16 = arith.constant 0 : index
    %23 = vector.load %arg9[%c0_15, %c0_16] : memref<8x32xf32, #tpu.memory_space<vmem>>, vector<8x8xf32>
    %24 = vector.broadcast %19 : vector<8x1xf32> to vector<8x8xf32>
    %25 = arith.mulf %24, %23 : vector<8x8xf32>
    %cst_17 = arith.constant dense<0.000000e+00> : vector<8xf32>
    %26 = vector.multi_reduction <add>, %22, %cst_17 [1] : vector<8x8xf32> to vector<8xf32>
    %27 = vector.shape_cast %26 : vector<8xf32> to vector<8x1xf32>
    %28 = vector.broadcast %27 : vector<8x1xf32> to vector<8x8xf32>
    %29 = arith.addf %25, %28 : vector<8x8xf32>
    %c0_18 = arith.constant 0 : index
    %c0_19 = arith.constant 0 : index
    %30 = vector.load %arg9[%c0_18, %c0_19] : memref<8x32xf32, #tpu.memory_space<vmem>>, vector<8x8xf32>
    tpu.vector_store %arg9[%c0_18, %c0_19], %29 {strides = array<i32>} : memref<8x32xf32, #tpu.memory_space<vmem>>, vector<8x8xf32>,
    %c0_20 = arith.constant 0 : index
    %c0_21 = arith.constant 0 : index
    %31 = vector.load %arg10[%c0_20, %c0_21] : memref<8x32xf32, #tpu.memory_space<vmem>>, vector<8x8xf32>
    %32 = vector.broadcast %19 : vector<8x1xf32> to vector<8x8xf32>
    %33 = arith.mulf %32, %31 : vector<8x8xf32>
    %34 = arith.truncf %22 : vector<8x8xf32> to vector<8x8xbf16>
    %cst_22 = arith.constant dense<0.000000e+00> : vector<8x8xf32>
    %35 = tpu.matmul %34, %10, %cst_22 {dimension_numbers = #tpu.dot_dimension_numbers<[1], [0], [0], [1], [0, 0, 1, 1], [], []>} : vector<8x8xbf16>, vector<8x8xbf16>, vector<8x8xf32> -> vector<8x8xf32>
    %36 = arith.addf %33, %35 : vector<8x8xf32>
    %c0_23 = arith.constant 0 : index
    %c0_24 = arith.constant 0 : index
    %37 = vector.load %arg10[%c0_23, %c0_24] : memref<8x32xf32, #tpu.memory_space<vmem>>, vector<8x8xf32>
    tpu.vector_store %arg10[%c0_23, %c0_24], %36 {strides = array<i32>} : memref<8x32xf32, #tpu.memory_space<vmem>>, vector<8x8xf32>,
    %c0_25 = arith.constant 0 : index
    %c0_26 = arith.constant 0 : index
    %38 = vector.load %arg8[%c0_25, %c0_26] : memref<8x4xf32, #tpu.memory_space<vmem>>, vector<8x1xf32>
    tpu.vector_store %arg8[%c0_25, %c0_26], %17 {strides = array<i32>} : memref<8x4xf32, #tpu.memory_space<vmem>>, vector<8x1xf32>,
    %c0_27 = arith.constant 0 : index
    %c0_28 = arith.constant 0 : index
    %c8 = arith.constant 8 : index
    %39 = vector.load %arg3[%c0_27, %c0_28, %c8] : memref<1x8x32xbf16, #tpu.memory_space<vmem>>, vector<1x8x8xbf16>
    %40 = vector.shape_cast %39 : vector<1x8x8xbf16> to vector<8x8xbf16>
    %c0_29 = arith.constant 0 : index
    %c0_30 = arith.constant 0 : index
    %c8_31 = arith.constant 8 : index
    %41 = vector.load %arg4[%c0_29, %c0_30, %c8_31] : memref<1x8x32xbf16, #tpu.memory_space<vmem>>, vector<1x8x8xbf16>
    %42 = vector.shape_cast %41 : vector<1x8x8xbf16> to vector<8x8xbf16>
    %c0_32 = arith.constant 0 : index
    %c0_33 = arith.constant 0 : index
    %c8_34 = arith.constant 8 : index
    %43 = vector.load %arg5[%c0_32, %c0_33, %c8_34] : memref<1x8x32xbf16, #tpu.memory_space<vmem>>, vector<1x8x8xbf16>
    %44 = vector.shape_cast %43 : vector<1x8x8xbf16> to vector<8x8xbf16>
    %cst_35 = arith.constant dense<0.000000e+00> : vector<8x8xf32>
    %45 = tpu.matmul %40, %42, %cst_35 {dimension_numbers = #tpu.dot_dimension_numbers<[1], [1], [0], [0], [0, 0, 1, 0], [], []>} : vector<8x8xbf16>, vector<8x8xbf16>, vector<8x8xf32> -> vector<8x8xf32>
    %46 = vector.broadcast %4 : vector<1x8xf32> to vector<8x8xf32>
    %47 = arith.addf %45, %46 : vector<8x8xf32>
    %c0_36 = arith.constant 0 : index
    %c1 = arith.constant 1 : index
    %48 = vector.load %arg8[%c0_36, %c1] : memref<8x4xf32, #tpu.memory_space<vmem>>, vector<8x1xf32>
    %cst_37 = arith.constant dense<0xFF800000> : vector<8xf32>
    %49 = vector.multi_reduction <maximumf>, %47, %cst_37 [1] : vector<8x8xf32> to vector<8xf32>
    %50 = vector.shape_cast %49 : vector<8xf32> to vector<8x1xf32>
    %51 = arith.maximumf %48, %50 : vector<8x1xf32>
    %52 = arith.subf %48, %51 : vector<8x1xf32>
    %53 = math.exp %52 : vector<8x1xf32>
    %54 = vector.broadcast %51 : vector<8x1xf32> to vector<8x8xf32>
    %55 = arith.subf %47, %54 : vector<8x8xf32>
    %56 = math.exp %55 : vector<8x8xf32>
    %c0_38 = arith.constant 0 : index
    %c8_39 = arith.constant 8 : index
    %57 = vector.load %arg9[%c0_38, %c8_39] : memref<8x32xf32, #tpu.memory_space<vmem>>, vector<8x8xf32>
    %58 = vector.broadcast %53 : vector<8x1xf32> to vector<8x8xf32>
    %59 = arith.mulf %58, %57 : vector<8x8xf32>
    %cst_40 = arith.constant dense<0.000000e+00> : vector<8xf32>
    %60 = vector.multi_reduction <add>, %56, %cst_40 [1] : vector<8x8xf32> to vector<8xf32>
    %61 = vector.shape_cast %60 : vector<8xf32> to vector<8x1xf32>
    %62 = vector.broadcast %61 : vector<8x1xf32> to vector<8x8xf32>
    %63 = arith.addf %59, %62 : vector<8x8xf32>
    %c0_41 = arith.constant 0 : index
    %c8_42 = arith.constant 8 : index
    %64 = vector.load %arg9[%c0_41, %c8_42] : memref<8x32xf32, #tpu.memory_space<vmem>>, vector<8x8xf32>
    tpu.vector_store %arg9[%c0_41, %c8_42], %63 {strides = array<i32>} : memref<8x32xf32, #tpu.memory_space<vmem>>, vector<8x8xf32>,
    %c0_43 = arith.constant 0 : index
    %c8_44 = arith.constant 8 : index
    %65 = vector.load %arg10[%c0_43, %c8_44] : memref<8x32xf32, #tpu.memory_space<vmem>>, vector<8x8xf32>
    %66 = vector.broadcast %53 : vector<8x1xf32> to vector<8x8xf32>
    %67 = arith.mulf %66, %65 : vector<8x8xf32>
    %68 = arith.truncf %56 : vector<8x8xf32> to vector<8x8xbf16>
    %cst_45 = arith.constant dense<0.000000e+00> : vector<8x8xf32>
    %69 = tpu.matmul %68, %44, %cst_45 {dimension_numbers = #tpu.dot_dimension_numbers<[1], [0], [0], [1], [0, 0, 1, 1], [], []>} : vector<8x8xbf16>, vector<8x8xbf16>, vector<8x8xf32> -> vector<8x8xf32>
    %70 = arith.addf %67, %69 : vector<8x8xf32>
    %c0_46 = arith.constant 0 : index
    %c8_47 = arith.constant 8 : index
    %71 = vector.load %arg10[%c0_46, %c8_47] : memref<8x32xf32, #tpu.memory_space<vmem>>, vector<8x8xf32>
    tpu.vector_store %arg10[%c0_46, %c8_47], %70 {strides = array<i32>} : memref<8x32xf32, #tpu.memory_space<vmem>>, vector<8x8xf32>,
    %c0_48 = arith.constant 0 : index
    %c1_49 = arith.constant 1 : index
    %72 = vector.load %arg8[%c0_48, %c1_49] : memref<8x4xf32, #tpu.memory_space<vmem>>, vector<8x1xf32>
    tpu.vector_store %arg8[%c0_48, %c1_49], %51 {strides = array<i32>} : memref<8x4xf32, #tpu.memory_space<vmem>>, vector<8x1xf32>,
    %c0_50 = arith.constant 0 : index
    %c0_51 = arith.constant 0 : index
    %c16 = arith.constant 16 : index
    %73 = vector.load %arg3[%c0_50, %c0_51, %c16] : memref<1x8x32xbf16, #tpu.memory_space<vmem>>, vector<1x8x8xbf16>
    %74 = vector.shape_cast %73 : vector<1x8x8xbf16> to vector<8x8xbf16>
    %c0_52 = arith.constant 0 : index
    %c0_53 = arith.constant 0 : index
    %c16_54 = arith.constant 16 : index
    %75 = vector.load %arg4[%c0_52, %c0_53, %c16_54] : memref<1x8x32xbf16, #tpu.memory_space<vmem>>, vector<1x8x8xbf16>
    %76 = vector.shape_cast %75 : vector<1x8x8xbf16> to vector<8x8xbf16>
    %c0_55 = arith.constant 0 : index
    %c0_56 = arith.constant 0 : index
    %c16_57 = arith.constant 16 : index
    %77 = vector.load %arg5[%c0_55, %c0_56, %c16_57] : memref<1x8x32xbf16, #tpu.memory_space<vmem>>, vector<1x8x8xbf16>
    %78 = vector.shape_cast %77 : vector<1x8x8xbf16> to vector<8x8xbf16>
    %cst_58 = arith.constant dense<0.000000e+00> : vector<8x8xf32>
    %79 = tpu.matmul %74, %76, %cst_58 {dimension_numbers = #tpu.dot_dimension_numbers<[1], [1], [0], [0], [0, 0, 1, 0], [], []>} : vector<8x8xbf16>, vector<8x8xbf16>, vector<8x8xf32> -> vector<8x8xf32>
    %80 = vector.broadcast %4 : vector<1x8xf32> to vector<8x8xf32>
    %81 = arith.addf %79, %80 : vector<8x8xf32>
    %c0_59 = arith.constant 0 : index
    %c2 = arith.constant 2 : index
    %82 = vector.load %arg8[%c0_59, %c2] : memref<8x4xf32, #tpu.memory_space<vmem>>, vector<8x1xf32>
    %cst_60 = arith.constant dense<0xFF800000> : vector<8xf32>
    %83 = vector.multi_reduction <maximumf>, %81, %cst_60 [1] : vector<8x8xf32> to vector<8xf32>
    %84 = vector.shape_cast %83 : vector<8xf32> to vector<8x1xf32>
    %85 = arith.maximumf %82, %84 : vector<8x1xf32>
    %86 = arith.subf %82, %85 : vector<8x1xf32>
    %87 = math.exp %86 : vector<8x1xf32>
    %88 = vector.broadcast %85 : vector<8x1xf32> to vector<8x8xf32>
    %89 = arith.subf %81, %88 : vector<8x8xf32>
    %90 = math.exp %89 : vector<8x8xf32>
    %c0_61 = arith.constant 0 : index
    %c16_62 = arith.constant 16 : index
    %91 = vector.load %arg9[%c0_61, %c16_62] : memref<8x32xf32, #tpu.memory_space<vmem>>, vector<8x8xf32>
    %92 = vector.broadcast %87 : vector<8x1xf32> to vector<8x8xf32>
    %93 = arith.mulf %92, %91 : vector<8x8xf32>
    %cst_63 = arith.constant dense<0.000000e+00> : vector<8xf32>
    %94 = vector.multi_reduction <add>, %90, %cst_63 [1] : vector<8x8xf32> to vector<8xf32>
    %95 = vector.shape_cast %94 : vector<8xf32> to vector<8x1xf32>
    %96 = vector.broadcast %95 : vector<8x1xf32> to vector<8x8xf32>
    %97 = arith.addf %93, %96 : vector<8x8xf32>
    %c0_64 = arith.constant 0 : index
    %c16_65 = arith.constant 16 : index
    %98 = vector.load %arg9[%c0_64, %c16_65] : memref<8x32xf32, #tpu.memory_space<vmem>>, vector<8x8xf32>
    tpu.vector_store %arg9[%c0_64, %c16_65], %97 {strides = array<i32>} : memref<8x32xf32, #tpu.memory_space<vmem>>, vector<8x8xf32>,
    %c0_66 = arith.constant 0 : index
    %c16_67 = arith.constant 16 : index
    %99 = vector.load %arg10[%c0_66, %c16_67] : memref<8x32xf32, #tpu.memory_space<vmem>>, vector<8x8xf32>
    %100 = vector.broadcast %87 : vector<8x1xf32> to vector<8x8xf32>
    %101 = arith.mulf %100, %99 : vector<8x8xf32>
    %102 = arith.truncf %90 : vector<8x8xf32> to vector<8x8xbf16>
    %cst_68 = arith.constant dense<0.000000e+00> : vector<8x8xf32>
    %103 = tpu.matmul %102, %78, %cst_68 {dimension_numbers = #tpu.dot_dimension_numbers<[1], [0], [0], [1], [0, 0, 1, 1], [], []>} : vector<8x8xbf16>, vector<8x8xbf16>, vector<8x8xf32> -> vector<8x8xf32>
    %104 = arith.addf %101, %103 : vector<8x8xf32>
    %c0_69 = arith.constant 0 : index
    %c16_70 = arith.constant 16 : index
    %105 = vector.load %arg10[%c0_69, %c16_70] : memref<8x32xf32, #tpu.memory_space<vmem>>, vector<8x8xf32>
    tpu.vector_store %arg10[%c0_69, %c16_70], %104 {strides = array<i32>} : memref<8x32xf32, #tpu.memory_space<vmem>>, vector<8x8xf32>,
    %c0_71 = arith.constant 0 : index
    %c2_72 = arith.constant 2 : index
    %106 = vector.load %arg8[%c0_71, %c2_72] : memref<8x4xf32, #tpu.memory_space<vmem>>, vector<8x1xf32>
    tpu.vector_store %arg8[%c0_71, %c2_72], %85 {strides = array<i32>} : memref<8x4xf32, #tpu.memory_space<vmem>>, vector<8x1xf32>,
    %c0_73 = arith.constant 0 : index
    %c0_74 = arith.constant 0 : index
    %c24 = arith.constant 24 : index
    %107 = vector.load %arg3[%c0_73, %c0_74, %c24] : memref<1x8x32xbf16, #tpu.memory_space<vmem>>, vector<1x8x8xbf16>
    %108 = vector.shape_cast %107 : vector<1x8x8xbf16> to vector<8x8xbf16>
    %c0_75 = arith.constant 0 : index
    %c0_76 = arith.constant 0 : index
    %c24_77 = arith.constant 24 : index
    %109 = vector.load %arg4[%c0_75, %c0_76, %c24_77] : memref<1x8x32xbf16, #tpu.memory_space<vmem>>, vector<1x8x8xbf16>
    %110 = vector.shape_cast %109 : vector<1x8x8xbf16> to vector<8x8xbf16>
    %c0_78 = arith.constant 0 : index
    %c0_79 = arith.constant 0 : index
    %c24_80 = arith.constant 24 : index
    %111 = vector.load %arg5[%c0_78, %c0_79, %c24_80] : memref<1x8x32xbf16, #tpu.memory_space<vmem>>, vector<1x8x8xbf16>
    %112 = vector.shape_cast %111 : vector<1x8x8xbf16> to vector<8x8xbf16>
    %cst_81 = arith.constant dense<0.000000e+00> : vector<8x8xf32>
    %113 = tpu.matmul %108, %110, %cst_81 {dimension_numbers = #tpu.dot_dimension_numbers<[1], [1], [0], [0], [0, 0, 1, 0], [], []>} : vector<8x8xbf16>, vector<8x8xbf16>, vector<8x8xf32> -> vector<8x8xf32>
    %114 = vector.broadcast %4 : vector<1x8xf32> to vector<8x8xf32>
    %115 = arith.addf %113, %114 : vector<8x8xf32>
    %c0_82 = arith.constant 0 : index
    %c3 = arith.constant 3 : index
    %116 = vector.load %arg8[%c0_82, %c3] : memref<8x4xf32, #tpu.memory_space<vmem>>, vector<8x1xf32>
    %cst_83 = arith.constant dense<0xFF800000> : vector<8xf32>
    %117 = vector.multi_reduction <maximumf>, %115, %cst_83 [1] : vector<8x8xf32> to vector<8xf32>
    %118 = vector.shape_cast %117 : vector<8xf32> to vector<8x1xf32>
    %119 = arith.maximumf %116, %118 : vector<8x1xf32>
    %120 = arith.subf %116, %119 : vector<8x1xf32>
    %121 = math.exp %120 : vector<8x1xf32>
    %122 = vector.broadcast %119 : vector<8x1xf32> to vector<8x8xf32>
    %123 = arith.subf %115, %122 : vector<8x8xf32>
    %124 = math.exp %123 : vector<8x8xf32>
    %c0_84 = arith.constant 0 : index
    %c24_85 = arith.constant 24 : index
    %125 = vector.load %arg9[%c0_84, %c24_85] : memref<8x32xf32, #tpu.memory_space<vmem>>, vector<8x8xf32>
    %126 = vector.broadcast %121 : vector<8x1xf32> to vector<8x8xf32>
    %127 = arith.mulf %126, %125 : vector<8x8xf32>
    %cst_86 = arith.constant dense<0.000000e+00> : vector<8xf32>
    %128 = vector.multi_reduction <add>, %124, %cst_86 [1] : vector<8x8xf32> to vector<8xf32>
    %129 = vector.shape_cast %128 : vector<8xf32> to vector<8x1xf32>
    %130 = vector.broadcast %129 : vector<8x1xf32> to vector<8x8xf32>
    %131 = arith.addf %127, %130 : vector<8x8xf32>
    %c0_87 = arith.constant 0 : index
    %c24_88 = arith.constant 24 : index
    %132 = vector.load %arg9[%c0_87, %c24_88] : memref<8x32xf32, #tpu.memory_space<vmem>>, vector<8x8xf32>
    tpu.vector_store %arg9[%c0_87, %c24_88], %131 {strides = array<i32>} : memref<8x32xf32, #tpu.memory_space<vmem>>, vector<8x8xf32>,
    %c0_89 = arith.constant 0 : index
    %c24_90 = arith.constant 24 : index
    %133 = vector.load %arg10[%c0_89, %c24_90] : memref<8x32xf32, #tpu.memory_space<vmem>>, vector<8x8xf32>
    %134 = vector.broadcast %121 : vector<8x1xf32> to vector<8x8xf32>
    %135 = arith.mulf %134, %133 : vector<8x8xf32>
    %136 = arith.truncf %124 : vector<8x8xf32> to vector<8x8xbf16>
    %cst_91 = arith.constant dense<0.000000e+00> : vector<8x8xf32>
    %137 = tpu.matmul %136, %112, %cst_91 {dimension_numbers = #tpu.dot_dimension_numbers<[1], [0], [0], [1], [0, 0, 1, 1], [], []>} : vector<8x8xbf16>, vector<8x8xbf16>, vector<8x8xf32> -> vector<8x8xf32>
    %138 = arith.addf %135, %137 : vector<8x8xf32>
    %c0_92 = arith.constant 0 : index
    %c24_93 = arith.constant 24 : index
    %139 = vector.load %arg10[%c0_92, %c24_93] : memref<8x32xf32, #tpu.memory_space<vmem>>, vector<8x8xf32>
    tpu.vector_store %arg10[%c0_92, %c24_93], %138 {strides = array<i32>} : memref<8x32xf32, #tpu.memory_space<vmem>>, vector<8x8xf32>,
    %c0_94 = arith.constant 0 : index
    %c3_95 = arith.constant 3 : index
    %140 = vector.load %arg8[%c0_94, %c3_95] : memref<8x4xf32, #tpu.memory_space<vmem>>, vector<8x1xf32>
    tpu.vector_store %arg8[%c0_94, %c3_95], %119 {strides = array<i32>} : memref<8x4xf32, #tpu.memory_space<vmem>>, vector<8x1xf32>,
    %c0_i32_96 = arith.constant 0 : i32
    %141 = arith.cmpi eq, %arg2, %c0_i32_96 : i32
    %142 = arith.extui %141 : i1 to i32
    %c0_i32_97 = arith.constant 0 : i32
    %143 = arith.cmpi ne, %142, %c0_i32_97 : i32
    scf.if %143 {
      %c0_98 = arith.constant 0 : index
      %c0_99 = arith.constant 0 : index
      %144 = vector.load %arg9[%c0_98, %c0_99] : memref<8x32xf32, #tpu.memory_space<vmem>>, vector<8x32xf32>
      %145 = tpu.reciprocal %144 {approx = true} : vector<8x32xf32> -> vector<8x32xf32>
      %c0_100 = arith.constant 0 : index
      %c0_101 = arith.constant 0 : index
      %146 = vector.load %arg10[%c0_100, %c0_101] : memref<8x32xf32, #tpu.memory_space<vmem>>, vector<8x32xf32>
      %147 = arith.mulf %146, %145 : vector<8x32xf32>
      %148 = arith.truncf %147 : vector<8x32xf32> to vector<8x32xbf16>
      %c0_102 = arith.constant 0 : index
      %c0_103 = arith.constant 0 : index
      %c0_104 = arith.constant 0 : index
      %149 = vector.load %arg7[%c0_102, %c0_103, %c0_104] : memref<1x8x32xbf16, #tpu.memory_space<vmem>>, vector<1x8x32xbf16>
      %150 = vector.shape_cast %149 : vector<1x8x32xbf16> to vector<8x32xbf16>
      %151 = vector.shape_cast %148 : vector<8x32xbf16> to vector<1x8x32xbf16>
      tpu.vector_store %arg7[%c0_102, %c0_103, %c0_104], %151 {strides = array<i32>} : memref<1x8x32xbf16, #tpu.memory_space<vmem>>, vector<1x8x32xbf16>,
    } else {
    }
    return
  }
  func.func @transform_0(%arg0: i32, %arg1: i32, %arg2: i32) -> (i32, i32, i32) {
    %c0_i32 = arith.constant 0 : i32
    %c0_i32_0 = arith.constant 0 : i32
    return %arg0, %arg1, %c0_i32 : i32, i32, i32
  }
  func.func @transform_1(%arg0: i32, %arg1: i32, %arg2: i32) -> (i32, i32, i32) {
    %c0_i32 = arith.constant 0 : i32
    %c0_i32_0 = arith.constant 0 : i32
    return %arg0, %arg2, %c0_i32 : i32, i32, i32
  }
  func.func @transform_2(%arg0: i32, %arg1: i32, %arg2: i32) -> (i32, i32, i32) {
    %c0_i32 = arith.constant 0 : i32
    %c0_i32_0 = arith.constant 0 : i32
    return %arg0, %arg2, %c0_i32 : i32, i32, i32
  }
  func.func @transform_3(%arg0: i32, %arg1: i32, %arg2: i32) -> (i32, i32, i32) {
    %c0_i32 = arith.constant 0 : i32
    %c0_i32_0 = arith.constant 0 : i32
    return %arg0, %c0_i32, %arg2 : i32, i32, i32
  }
  func.func @transform_4(%arg0: i32, %arg1: i32, %arg2: i32) -> (i32, i32, i32) {
    %c0_i32 = arith.constant 0 : i32
    %c0_i32_0 = arith.constant 0 : i32
    return %arg0, %arg1, %c0_i32 : i32, i32, i32
  }
}

module attributes {stable_mosaic.version = 11 : i64} {
  func.func @linear_kernel(%arg0: i32, %arg1: i32, %arg2: i32, %arg3: memref<16x32xbf16, #tpu.memory_space<vmem>>, %arg4: memref<32x32xbf16, #tpu.memory_space<vmem>>, %arg5: memref<1x32xf32, #tpu.memory_space<vmem>>, %arg6: memref<16x32xf32, #tpu.memory_space<vmem>>, %arg7: memref<16x32xf32, #tpu.memory_space<vmem>>) attributes {dimension_semantics = [#tpu.dimension_semantics<parallel>, #tpu.dimension_semantics<parallel>, #tpu.dimension_semantics<arbitrary>], iteration_bounds = array<i64: 1, 1, 1>, scalar_prefetch = 0 : i64, scratch_operands = 1 : i64, tpu.core_type = #tpu.core_type<tc>, window_params = [{transform_indices = @transform_0, window_bounds = array<i64: 16, 32>}, {transform_indices = @transform_1, window_bounds = array<i64: 32, 32>}, {transform_indices = @transform_2, window_bounds = array<i64: 1, 32>}, {transform_indices = @transform_3, window_bounds = array<i64: 16, 32>}]} {
    %c0_i32 = arith.constant 0 : i32
    %0 = arith.cmpi eq, %arg2, %c0_i32 : i32
    %1 = arith.extui %0 : i1 to i32
    %c0_i32_0 = arith.constant 0 : i32
    %2 = arith.cmpi ne, %1, %c0_i32_0 : i32
    scf.if %2 {
      %cst_10 = arith.constant 0.000000e+00 : f32
      %12 = vector.broadcast %cst_10 : f32 to vector<16x32xf32>
      %c0_11 = arith.constant 0 : index
      %c0_12 = arith.constant 0 : index
      %13 = vector.load %arg7[%c0_11, %c0_12] : memref<16x32xf32, #tpu.memory_space<vmem>>, vector<16x32xf32>
      tpu.vector_store %arg7[%c0_11, %c0_12], %12 {strides = array<i32>} : memref<16x32xf32, #tpu.memory_space<vmem>>, vector<16x32xf32>,
    } else {
    }
    %c0 = arith.constant 0 : index
    %c0_1 = arith.constant 0 : index
    %3 = vector.load %arg7[%c0, %c0_1] : memref<16x32xf32, #tpu.memory_space<vmem>>, vector<16x32xf32>
    %c0_2 = arith.constant 0 : index
    %c0_3 = arith.constant 0 : index
    %4 = vector.load %arg3[%c0_2, %c0_3] : memref<16x32xbf16, #tpu.memory_space<vmem>>, vector<16x32xbf16>
    %c0_4 = arith.constant 0 : index
    %c0_5 = arith.constant 0 : index
    %5 = vector.load %arg4[%c0_4, %c0_5] : memref<32x32xbf16, #tpu.memory_space<vmem>>, vector<32x32xbf16>
    %cst = arith.constant dense<0.000000e+00> : vector<16x32xf32>
    %6 = tpu.matmul %4, %5, %cst {dimension_numbers = #tpu.dot_dimension_numbers<[1], [0], [0], [1], [0, 0, 1, 1], [], []>} : vector<16x32xbf16>, vector<32x32xbf16>, vector<16x32xf32> -> vector<16x32xf32>
    %7 = arith.addf %3, %6 : vector<16x32xf32>
    %c0_6 = arith.constant 0 : index
    %c0_7 = arith.constant 0 : index
    %8 = vector.load %arg7[%c0_6, %c0_7] : memref<16x32xf32, #tpu.memory_space<vmem>>, vector<16x32xf32>
    tpu.vector_store %arg7[%c0_6, %c0_7], %7 {strides = array<i32>} : memref<16x32xf32, #tpu.memory_space<vmem>>, vector<16x32xf32>,
    %c0_i32_8 = arith.constant 0 : i32
    %9 = arith.cmpi eq, %arg2, %c0_i32_8 : i32
    %10 = arith.extui %9 : i1 to i32
    %c0_i32_9 = arith.constant 0 : i32
    %11 = arith.cmpi ne, %10, %c0_i32_9 : i32
    scf.if %11 {
      %c0_10 = arith.constant 0 : index
      %c0_11 = arith.constant 0 : index
      %12 = vector.load %arg7[%c0_10, %c0_11] : memref<16x32xf32, #tpu.memory_space<vmem>>, vector<16x32xf32>
      %c0_12 = arith.constant 0 : index
      %c0_13 = arith.constant 0 : index
      %13 = vector.load %arg5[%c0_12, %c0_13] : memref<1x32xf32, #tpu.memory_space<vmem>>, vector<1x32xf32>
      %14 = vector.broadcast %13 : vector<1x32xf32> to vector<16x32xf32>
      %15 = arith.addf %12, %14 : vector<16x32xf32>
      %c0_14 = arith.constant 0 : index
      %c0_15 = arith.constant 0 : index
      %16 = vector.load %arg6[%c0_14, %c0_15] : memref<16x32xf32, #tpu.memory_space<vmem>>, vector<16x32xf32>
      tpu.vector_store %arg6[%c0_14, %c0_15], %15 {strides = array<i32>} : memref<16x32xf32, #tpu.memory_space<vmem>>, vector<16x32xf32>,
    } else {
    }
    return
  }
  func.func @transform_0(%arg0: i32, %arg1: i32, %arg2: i32) -> (i32, i32) {
    %c0_i32 = arith.constant 0 : i32
    return %arg0, %arg2 : i32, i32
  }
  func.func @transform_1(%arg0: i32, %arg1: i32, %arg2: i32) -> (i32, i32) {
    %c0_i32 = arith.constant 0 : i32
    return %arg2, %arg1 : i32, i32
  }
  func.func @transform_2(%arg0: i32, %arg1: i32, %arg2: i32) -> (i32, i32) {
    %c0_i32 = arith.constant 0 : i32
    %c0_i32_0 = arith.constant 0 : i32
    return %c0_i32, %arg1 : i32, i32
  }
  func.func @transform_3(%arg0: i32, %arg1: i32, %arg2: i32) -> (i32, i32) {
    %c0_i32 = arith.constant 0 : i32
    return %arg0, %arg1 : i32, i32
  }
}

</mosaic_0001>

<llo_original>
// kernel: multi_headed_attention.5
$region0: #{multi_headed_attention.5}
  #allocation0 [shape = 'u32[]', space=smem, size = 0x4, offset = 0x4, fixed_abs, tag = 'smem constant byte address 0x4 - core index']
  #allocation1 [shape = 'u32[144,128]{1,0:T(1,128)}', space=vmem, size = 0x12000, scoped, tag = 'internal scratch']
  #allocation2 [shape = 'f32[16,32]{1,0:T(8,128)}', space=vmem, size = 0x2000, scoped, tag = 'scratch operand']
  %s0 = inlined_call_operand.vmem [shape: bf16[16,32], index: 0, kind: input, shape index: {}]
  %s1 = inlined_call_operand.vmem [shape: bf16[32,32], index: 1, kind: input, shape index: {}]
  %s2 = inlined_call_operand.vmem [shape: f32[1,32], index: 2, kind: input, shape index: {}]
  %s3 = inlined_call_operand.vmem [shape: bf16[16,32], index: 3, kind: output, shape index: {}]
  %s4 = sld [smem:[#allocation0]]
  $region30: #{multi_headed_attention.5} parent=0
    _
  %s6 = ssub.s32 1, %s4
  %s7 = scalar_select 0, %s6, %s4
  // Predicated region
  $region2: #{multi_headed_attention.5} parent=0 // pred_check
    _
  $region3: #{multi_headed_attention.5} parent=0 // pred_check_branch
    %9 = sbr.rel (0) target = $region5
  $region4: #{multi_headed_attention.5} parent=0 // pred_region
    _
  $region5: #{multi_headed_attention.5} parent=0 // pred_fallthru
    _
  // Predicated region
  $region6: #{multi_headed_attention.5} parent=0 // pred_check
    _
  $region7: #{multi_headed_attention.5} parent=0 // pred_check_branch
    %11 = sbr.rel (0) target = $region9
  $region8: #{multi_headed_attention.5} parent=0 // pred_region
    _
  $region9: #{multi_headed_attention.5} parent=0 // pred_fallthru
    _
  // Predicated region
  $region10: #{multi_headed_attention.5} parent=0 // pred_check
    _
  $region11: #{multi_headed_attention.5} parent=0 // pred_check_branch
    %13 = sbr.rel (0) target = $region13
  $region12: #{multi_headed_attention.5} parent=0 // pred_region
    _
  $region13: #{multi_headed_attention.5} parent=0 // pred_fallthru
    _
  %p15 = scmp.eq.s32.totalorder 0, 0
  // Predicated region
  $region14: #{multi_headed_attention.5} parent=0 // pred_check
    %p16 = pneg %p15
  $region15: #{multi_headed_attention.5} parent=0 // pred_check_branch
    %18 = sbr.rel (%p16) target = $region17
  $region16: #{multi_headed_attention.5} parent=0 // pred_region
    %vm19 = vcmask 261120
    %20 = vst.msk [vmem:[#allocation2] sm:$0xff] %vm19, 0.0
    %21 = vst.msk [vmem:[#allocation2 + $0x8] sm:$0xff] %vm19, 0.0
  $region17: #{multi_headed_attention.5} parent=0 // pred_fallthru
    _
  %v22 = vld [vmem:[#allocation2] sm:$0xff]
  %v23 = vld [vmem:[#allocation2 + $0x8] sm:$0xff]
  %v24 = vld [vmem:[%s0] sm:$0xf]
  %v25 = vld [vmem:[%s0 + $0x4] sm:$0xf]
  %v26 = vld [vmem:[%s1] sm:$0xf]
  %v27 = vld [vmem:[%s1 + $0x4] sm:$0xf]
  %v28 = vld [vmem:[%s1 + $0x8] sm:$0xf]
  %v29 = vld [vmem:[%s1 + $0xc] sm:$0xf]
  %v32 = vunpack.c.l.b16 %v24
  %v33 = vunpack.c.l.b16 %v25
  %v34 = vpack.c.b16 %v33, %v32
  %v39 = vunpack.c.l.b16 %v26
  %v40 = vunpack.c.l.b16 %v27
  %v41 = vunpack.c.l.b16 %v28
  %v42 = vunpack.c.l.b16 %v29
  %v43 = vpack.c.b16 %v40, %v39
  %v44 = vpack.c.b16 %v42, %v41
  %vm47 = vcmask 261120
  %v49 = vsel %vm47, %v34, 0
  %51 = vmatprep.subr.bf16.mxu0 0
  %52 = vmatpush1.bf16.msra.mxu0 0
  %53 = vmatprep.subr.bf16.mxu0 0
  %54 = vmatpush1.bf16.msra.mxu0 0
  %55 = vmatprep.subr.bf16.mxu0 0
  %56 = vmatpush1.bf16.msra.mxu0 0
  %57 = vmatprep.subr.bf16.mxu0 0
  %58 = vmatpush1.bf16.msra.mxu0 0
  %59 = vmatprep.subr.bf16.mxu0 0
  %60 = vmatpush1.bf16.msra.mxu0 0
  %61 = vmatprep.subr.bf16.mxu0 0
  %62 = vmatpush1.bf16.msra.mxu0 0
  %63 = vmatprep.subr.bf16.mxu0 0
  %64 = vmatpush1.bf16.msra.mxu0 %v44
  %65 = vmatprep.subr.bf16.mxu0 0
  %66 = vmatpush1.bf16.msra.mxu0 %v43
  %67 = vmatprep.subr.bf16.mxu0 0
  %68 = vmatpush2.bf16.msra.mxu0 0
  %69 = vmatprep.subr.bf16.mxu0 0
  %70 = vmatpush2.bf16.msra.mxu0 0
  %71 = vmatprep.subr.bf16.mxu0 0
  %72 = vmatpush2.bf16.msra.mxu0 0
  %73 = vmatprep.subr.bf16.mxu0 0
  %74 = vmatpush2.bf16.msra.mxu0 0
  %75 = vmatprep.subr.bf16.mxu0 0
  %76 = vmatpush2.bf16.msra.mxu0 0
  %77 = vmatprep.subr.bf16.mxu0 0
  %78 = vmatpush2.bf16.msra.mxu0 0
  %79 = vmatprep.subr.bf16.mxu0 0
  %80 = vmatpush2.bf16.msra.mxu0 0
  %81 = vmatprep.subr.bf16.mxu0 0
  %82 = vmatpush2.bf16.msra.mxu0 0
  %83 = vmatprep.mubr.bf16.mxu0 0
  %84 = vmatmul.mubr.bf16.gmra.mxu0 %v49
  %v85 = vpop.f32.mrf.mxu0
  %v86 = vadd.f32 0.0, %v85
  %v87 = vpop.f32.mrf.mxu0
  %v88 = vpop.f32.mrf.mxu0
  %v89 = vadd.f32 0.0, %v88
  %v90 = vpop.f32.mrf.mxu0
  %91 = vdwg.mxu0
  %v92 = vadd.f32 %v22, %v86
  %v93 = vadd.f32 %v23, %v89
  %94 = vst.msk [vmem:[#allocation2] sm:$0xff] %vm47, %v92
  %95 = vst.msk [vmem:[#allocation2 + $0x8] sm:$0xff] %vm47, %v93
  // Predicated region
  $region18: #{multi_headed_attention.5} parent=0 // pred_check
    %p96 = pneg %p15
  $region19: #{multi_headed_attention.5} parent=0 // pred_check_branch
    %98 = sbr.rel (%p96) target = $region21
  $region20: #{multi_headed_attention.5} parent=0 // pred_region
    %v99 = vld [vmem:[#allocation2] sm:$0xff]
    %v100 = vld [vmem:[#allocation2 + $0x8] sm:$0xff]
    %v101 = vld [vmem:[%s2] sm:$0x1]
    %v103 = vlaneseq
    %v104 = vshrl.u32 %v103, 7
    %v105 = vsub.s32 0, %v104
    %v106 = vrot.slane %v101, %v105
    %v108 = vadd.f32 %v99, %v106
    %v109 = vadd.f32 %v100, %v106
    %v110 = vpack.c.bf16 %v109, %v108
    %v112 = vunpack.c.l.b16 %v110
    %v113 = vunpack.c.h.b16 %v110
    %v114 = vpack.c.b16 %v112, %v112
    %v115 = vpack.c.b16 %v113, %v113
    %vm118 = vcmask 257024
    %119 = vst.msk [vmem:[%s3] sm:$0xf] %vm118, %v114
    %120 = vst.msk [vmem:[%s3 + $0x4] sm:$0xf] %vm118, %v115
  $region21: #{multi_headed_attention.5} parent=0 // pred_fallthru
    _
  // Predicated region
  $region22: #{multi_headed_attention.5} parent=0 // pred_check
    _
  $region23: #{multi_headed_attention.5} parent=0 // pred_check_branch
    %122 = sbr.rel (0) target = $region25
  $region24: #{multi_headed_attention.5} parent=0 // pred_region
    _
  $region25: #{multi_headed_attention.5} parent=0 // pred_fallthru
    _
  // Predicated region
  $region26: #{multi_headed_attention.5} parent=0 // pred_check
    _
  $region27: #{multi_headed_attention.5} parent=0 // pred_check_branch
    %124 = sbr.rel (0) target = $region29
  $region28: #{multi_headed_attention.5} parent=0 // pred_region
    _
  $region29: #{multi_headed_attention.5} parent=0 // pred_fallthru
    _

// kernel: multi_headed_attention.9
$region0: #{multi_headed_attention.9}
  #allocation0 [shape = 'u32[]', space=smem, size = 0x4, offset = 0x4, fixed_abs, tag = 'smem constant byte address 0x4 - core index']
  #allocation1 [shape = 'u32[144,128]{1,0:T(1,128)}', space=vmem, size = 0x12000, scoped, tag = 'internal scratch']
  #allocation2 [shape = 'f32[16,32]{1,0:T(8,128)}', space=vmem, size = 0x2000, scoped, tag = 'scratch operand']
  %s0 = inlined_call_operand.vmem [shape: bf16[16,32], index: 0, kind: input, shape index: {}]
  %s1 = inlined_call_operand.vmem [shape: bf16[32,32], index: 1, kind: input, shape index: {}]
  %s2 = inlined_call_operand.vmem [shape: f32[1,32], index: 2, kind: input, shape index: {}]
  %s3 = inlined_call_operand.hbm [shape: f32[16,32], index: 3, kind: output, shape index: {}]
  %s4 = sld [smem:[#allocation0]]
  $region30: #{multi_headed_attention.9} parent=0
    _
  %s6 = ssub.s32 1, %s4
  %s7 = scalar_select 0, %s6, %s4
  $region1: #{multi_headed_attention.9} parent=0
    #allocation3 [shape = 'u8[8192]{0}', space=vmem, size = 0x2000, scoped, tag = 'output window, operand 0, single buffered']
    #allocation4 [shape = 's32[1]{0}', space=sflag, size = 0x4, scoped, tag = 'scoped memory for multi_headed_attention.9']
    %8 = vsyncpa [#allocation4], 0
    // Predicated region
    $region2: #{multi_headed_attention.9} parent=1 // pred_check
      _
    $region3: #{multi_headed_attention.9} parent=1 // pred_check_branch
      %10 = sbr.rel (0) target = $region5
    $region4: #{multi_headed_attention.9} parent=1 // pred_region
      _
    $region5: #{multi_headed_attention.9} parent=1 // pred_fallthru
      _
    // Predicated region
    $region6: #{multi_headed_attention.9} parent=1 // pred_check
      _
    $region7: #{multi_headed_attention.9} parent=1 // pred_check_branch
      %12 = sbr.rel (0) target = $region9
    $region8: #{multi_headed_attention.9} parent=1 // pred_region
      _
    $region9: #{multi_headed_attention.9} parent=1 // pred_fallthru
      _
    // Predicated region
    $region10: #{multi_headed_attention.9} parent=1 // pred_check
      _
    $region11: #{multi_headed_attention.9} parent=1 // pred_check_branch
      %14 = sbr.rel (0) target = $region13
    $region12: #{multi_headed_attention.9} parent=1 // pred_region
      _
    $region13: #{multi_headed_attention.9} parent=1 // pred_fallthru
      _
    %p16 = scmp.eq.s32.totalorder 0, 0
    // Predicated region
    $region14: #{multi_headed_attention.9} parent=1 // pred_check
      %p17 = pneg %p16
    $region15: #{multi_headed_attention.9} parent=1 // pred_check_branch
      %19 = sbr.rel (%p17) target = $region17
    $region16: #{multi_headed_attention.9} parent=1 // pred_region
      %vm20 = vcmask 261120
      %21 = vst.msk [vmem:[#allocation2] sm:$0xff] %vm20, 0.0
      %22 = vst.msk [vmem:[#allocation2 + $0x8] sm:$0xff] %vm20, 0.0
    $region17: #{multi_headed_attention.9} parent=1 // pred_fallthru
      _
    %v23 = vld [vmem:[#allocation2] sm:$0xff]
    %v24 = vld [vmem:[#allocation2 + $0x8] sm:$0xff]
    %v25 = vld [vmem:[%s0] sm:$0xf]
    %v26 = vld [vmem:[%s0 + $0x4] sm:$0xf]
    %v27 = vld [vmem:[%s1] sm:$0xf]
    %v28 = vld [vmem:[%s1 + $0x4] sm:$0xf]
    %v29 = vld [vmem:[%s1 + $0x8] sm:$0xf]
    %v30 = vld [vmem:[%s1 + $0xc] sm:$0xf]
    %v33 = vunpack.c.l.b16 %v25
    %v34 = vunpack.c.l.b16 %v26
    %v35 = vpack.c.b16 %v34, %v33
    %v40 = vunpack.c.l.b16 %v27
    %v41 = vunpack.c.l.b16 %v28
    %v42 = vunpack.c.l.b16 %v29
    %v43 = vunpack.c.l.b16 %v30
    %v44 = vpack.c.b16 %v41, %v40
    %v45 = vpack.c.b16 %v43, %v42
    %vm48 = vcmask 261120
    %v50 = vsel %vm48, %v35, 0
    %52 = vmatprep.subr.bf16.mxu0 0
    %53 = vmatpush1.bf16.msra.mxu0 0
    %54 = vmatprep.subr.bf16.mxu0 0
    %55 = vmatpush1.bf16.msra.mxu0 0
    %56 = vmatprep.subr.bf16.mxu0 0
    %57 = vmatpush1.bf16.msra.mxu0 0
    %58 = vmatprep.subr.bf16.mxu0 0
    %59 = vmatpush1.bf16.msra.mxu0 0
    %60 = vmatprep.subr.bf16.mxu0 0
    %61 = vmatpush1.bf16.msra.mxu0 0
    %62 = vmatprep.subr.bf16.mxu0 0
    %63 = vmatpush1.bf16.msra.mxu0 0
    %64 = vmatprep.subr.bf16.mxu0 0
    %65 = vmatpush1.bf16.msra.mxu0 %v45
    %66 = vmatprep.subr.bf16.mxu0 0
    %67 = vmatpush1.bf16.msra.mxu0 %v44
    %68 = vmatprep.subr.bf16.mxu0 0
    %69 = vmatpush2.bf16.msra.mxu0 0
    %70 = vmatprep.subr.bf16.mxu0 0
    %71 = vmatpush2.bf16.msra.mxu0 0
    %72 = vmatprep.subr.bf16.mxu0 0
    %73 = vmatpush2.bf16.msra.mxu0 0
    %74 = vmatprep.subr.bf16.mxu0 0
    %75 = vmatpush2.bf16.msra.mxu0 0
    %76 = vmatprep.subr.bf16.mxu0 0
    %77 = vmatpush2.bf16.msra.mxu0 0
    %78 = vmatprep.subr.bf16.mxu0 0
    %79 = vmatpush2.bf16.msra.mxu0 0
    %80 = vmatprep.subr.bf16.mxu0 0
    %81 = vmatpush2.bf16.msra.mxu0 0
    %82 = vmatprep.subr.bf16.mxu0 0
    %83 = vmatpush2.bf16.msra.mxu0 0
    %84 = vmatprep.mubr.bf16.mxu0 0
    %85 = vmatmul.mubr.bf16.gmra.mxu0 %v50
    %v86 = vpop.f32.mrf.mxu0
    %v87 = vadd.f32 0.0, %v86
    %v88 = vpop.f32.mrf.mxu0
    %v89 = vpop.f32.mrf.mxu0
    %v90 = vadd.f32 0.0, %v89
    %v91 = vpop.f32.mrf.mxu0
    %92 = vdwg.mxu0
    %v93 = vadd.f32 %v23, %v87
    %v94 = vadd.f32 %v24, %v90
    %95 = vst.msk [vmem:[#allocation2] sm:$0xff] %vm48, %v93
    %96 = vst.msk [vmem:[#allocation2 + $0x8] sm:$0xff] %vm48, %v94
    // Predicated region
    $region18: #{multi_headed_attention.9} parent=1 // pred_check
      %p97 = pneg %p16
    $region19: #{multi_headed_attention.9} parent=1 // pred_check_branch
      %99 = sbr.rel (%p97) target = $region21
    $region20: #{multi_headed_attention.9} parent=1 // pred_region
      %v100 = vld [vmem:[#allocation2] sm:$0xff]
      %v101 = vld [vmem:[#allocation2 + $0x8] sm:$0xff]
      %v102 = vld [vmem:[%s2] sm:$0x1]
      %v104 = vlaneseq
      %v105 = vshrl.u32 %v104, 7
      %v106 = vsub.s32 0, %v105
      %v107 = vrot.slane %v102, %v106
      %v109 = vadd.f32 %v100, %v107
      %v110 = vadd.f32 %v101, %v107
      %111 = vst.msk [vmem:[#allocation3] sm:$0xff] %vm48, %v109
      %112 = vst.msk [vmem:[#allocation3 + $0x8] sm:$0xff] %vm48, %v110
    $region21: #{multi_headed_attention.9} parent=1 // pred_fallthru
      _
    // Predicated region
    $region22: #{multi_headed_attention.9} parent=1 // pred_check
      _
    $region23: #{multi_headed_attention.9} parent=1 // pred_check_branch
      %114 = sbr.rel (0) target = $region25
    $region24: #{multi_headed_attention.9} parent=1 // pred_region
      %s116 = ssub.s32 256, 256
      %117 = vsyncadd [#allocation4], %s116
      %s118 = sshll.u32 [#allocation3], 4
      %s119 = int_to_ptr.vmem [resolvable:$true] %s118
      %124 = dma.vmem_to_hbm [thread:$0]  %s119, 256, %s3, [#allocation4], 128, 128, 8
    $region25: #{multi_headed_attention.9} parent=1 // pred_fallthru
      _
    // Predicated region
    $region26: #{multi_headed_attention.9} parent=1 // pred_check
      _
    $region27: #{multi_headed_attention.9} parent=1 // pred_check_branch
      %126 = sbr.rel (0) target = $region29
    $region28: #{multi_headed_attention.9} parent=1 // pred_region
      %127 = dma.done [#allocation4], 256
    $region29: #{multi_headed_attention.9} parent=1 // pred_fallthru
      _
    %128 = vsyncpa [#allocation4], 1

// kernel: multi_headed_attention.8
$region0: #{multi_headed_attention.8}
  #allocation0 [shape = 'u32[]', space=smem, size = 0x4, offset = 0x4, fixed_abs, tag = 'smem constant byte address 0x4 - core index']
  #allocation1 [shape = 'u32[144,128]{1,0:T(1,128)}', space=vmem, size = 0x12000, scoped, tag = 'internal scratch']
  #allocation2 [shape = 'f32[8,4]{1,0:T(8,128)}', space=vmem, size = 0x1000, scoped, tag = 'scratch operand']
  #allocation3 [shape = 'f32[8,32]{1,0:T(8,128)}', space=vmem, size = 0x1000, scoped, tag = 'scratch operand']
  #allocation4 [shape = 'f32[8,32]{1,0:T(8,128)}', space=vmem, size = 0x1000, scoped, tag = 'scratch operand']
  %s0 = inlined_call_operand.vmem [shape: bf16[2,8,32], index: 0, kind: input, shape index: {}]
  %s1 = inlined_call_operand.vmem [shape: bf16[2,8,32], index: 1, kind: input, shape index: {}]
  %s2 = inlined_call_operand.vmem [shape: bf16[2,8,32], index: 2, kind: input, shape index: {}]
  %s3 = inlined_call_operand.vmem [shape: f32[2,1,8], index: 3, kind: input, shape index: {}]
  %s4 = inlined_call_operand.vmem [shape: bf16[2,8,32], index: 4, kind: output, shape index: {}]
  %s5 = sld [smem:[#allocation0]]
  $region57: #{multi_headed_attention.8} parent=0
    _
  %s7 = ssub.s32 1, %s5
  %s8 = scalar_select 0, %s7, %s5
  loop: start=0, step=1, limit=4
  $region2: #{multi_headed_attention.8} parent=0 // loop_pre_header
    _
  $region3: #{multi_headed_attention.8} parent=0 // loop_header
    %s10 = sphi 0, %s14
    %p11 = scmp.ge.s32.totalorder %s10, 4
    %s17 = sphi 0, %s36
    %s18 = sphi 0, %s32
    %s19 = sphi 0, %s28
    %s20 = sphi 0, %s17
    %s21 = sphi 0, %s18
    %s22 = sphi 0, %s19
    %s23 = sphi 0, %s20
    %s24 = sphi 0, %s21
    %s25 = sphi 0, %s22
    %s41 = sphi 0, %s43
    %s44 = sphi 0, %s41
    %s45 = sphi 0, %s44
    %s61 = sphi 0, %s45
    %s69 = sphi 0, %s71
    %s72 = sphi 0, %s69
    %s73 = sphi 0, %s72
    %s89 = sphi 0, %s73
    %s97 = sphi 0, %s99
    %s100 = sphi 0, %s97
    %s101 = sphi 0, %s100
    %s117 = sphi 0, %s101
    %s125 = sphi 0, %s127
    %s128 = sphi 0, %s125
    %s129 = sphi 0, %s128
    %s145 = sphi 0, %s129
    %s153 = sphi 0, %s155
    %s156 = sphi 0, %s153
    %s157 = sphi 0, %s156
    %s173 = sphi 0, %s157
  $region4: #{multi_headed_attention.8} parent=0 // loop_header_branch
    %13 = sbr.rel (%p11) target = $region8
  $region5: #{multi_headed_attention.8} parent=0 // loop_body
    %s15 = ssub.s32 %s10, 1
    %s16 = ssub.s32 %s10, 2
    %s26 = sadd.s32 1, %s19
    %p27 = scmp.ge.s32.totalorder %s26, 1
    %s28 = scalar_select %p27, 0, %s26
    %s29 = sadd.s32 1, %s18
    %s30 = scalar_select %p27, %s29, %s18
    %p31 = scmp.ge.s32.totalorder %s30, 1
    %s32 = scalar_select %p31, 0, %s30
    %s33 = sadd.s32 1, %s17
    %s34 = scalar_select %p31, %s33, %s17
    %p35 = scmp.ge.s32.totalorder %s34, 2
    %s36 = scalar_select %p35, 0, %s34
    %s37 = ssub.s32 %s17, %s36
    %s38 = ssub.s32 %s18, %s32
    %s39 = sor.u32 %s37, %s38
    %p40 = scmp.eq.s32.totalorder %s39, 0
    %s42 = sadd.s32 %s41, 1
    %s43 = scalar_select %p40, %s41, %s42
    %p46 = pneg %p40
    %p47 = scmp.eq.s32.totalorder %s10, 1
    %p48 = por %p46, %p47
    %p49 = scmp.ne.s32.totalorder %s41, %s44
    %p50 = scmp.eq.s32.totalorder %s10, 0
    %p51 = por %p49, %p50
    %p52 = scmp.ne.s32.totalorder %s41, %s44
    %p53 = scmp.eq.s32.totalorder %s15, 1
    %p54 = por %p52, %p53
    %p55 = scmp.ne.s32.totalorder %s44, %s45
    %p56 = scmp.eq.s32.totalorder %s15, 0
    %p57 = por %p55, %p56
    %p58 = scmp.ne.s32.totalorder %s44, %s45
    %p59 = scmp.eq.s32.totalorder %s16, 1
    %p60 = por %p58, %p59
    %p62 = scmp.ne.s32.totalorder %s45, %s61
    %p63 = scmp.eq.s32.totalorder %s16, 0
    %p64 = por %p62, %p63
    %s65 = ssub.s32 %s17, %s36
    %s66 = ssub.s32 %s19, %s28
    %s67 = sor.u32 %s65, %s66
    %p68 = scmp.eq.s32.totalorder %s67, 0
    %s70 = sadd.s32 %s69, 1
    %s71 = scalar_select %p68, %s69, %s70
    %p74 = pneg %p68
    %p75 = scmp.eq.s32.totalorder %s10, 1
    %p76 = por %p74, %p75
    %p77 = scmp.ne.s32.totalorder %s69, %s72
    %p78 = scmp.eq.s32.totalorder %s10, 0
    %p79 = por %p77, %p78
    %p80 = scmp.ne.s32.totalorder %s69, %s72
    %p81 = scmp.eq.s32.totalorder %s15, 1
    %p82 = por %p80, %p81
    %p83 = scmp.ne.s32.totalorder %s72, %s73
    %p84 = scmp.eq.s32.totalorder %s15, 0
    %p85 = por %p83, %p84
    %p86 = scmp.ne.s32.totalorder %s72, %s73
    %p87 = scmp.eq.s32.totalorder %s16, 1
    %p88 = por %p86, %p87
    %p90 = scmp.ne.s32.totalorder %s73, %s89
    %p91 = scmp.eq.s32.totalorder %s16, 0
    %p92 = por %p90, %p91
    %s93 = ssub.s32 %s17, %s36
    %s94 = ssub.s32 %s19, %s28
    %s95 = sor.u32 %s93, %s94
    %p96 = scmp.eq.s32.totalorder %s95, 0
    %s98 = sadd.s32 %s97, 1
    %s99 = scalar_select %p96, %s97, %s98
    %p102 = pneg %p96
    %p103 = scmp.eq.s32.totalorder %s10, 1
    %p104 = por %p102, %p103
    %p105 = scmp.ne.s32.totalorder %s97, %s100
    %p106 = scmp.eq.s32.totalorder %s10, 0
    %p107 = por %p105, %p106
    %p108 = scmp.ne.s32.totalorder %s97, %s100
    %p109 = scmp.eq.s32.totalorder %s15, 1
    %p110 = por %p108, %p109
    %p111 = scmp.ne.s32.totalorder %s100, %s101
    %p112 = scmp.eq.s32.totalorder %s15, 0
    %p113 = por %p111, %p112
    %p114 = scmp.ne.s32.totalorder %s100, %s101
    %p115 = scmp.eq.s32.totalorder %s16, 1
    %p116 = por %p114, %p115
    %p118 = scmp.ne.s32.totalorder %s101, %s117
    %p119 = scmp.eq.s32.totalorder %s16, 0
    %p120 = por %p118, %p119
    %s121 = ssub.s32 %s17, %s36
    %s122 = ssub.s32 %s19, %s28
    %s123 = sor.u32 %s121, %s122
    %p124 = scmp.eq.s32.totalorder %s123, 0
    %s126 = sadd.s32 %s125, 1
    %s127 = scalar_select %p124, %s125, %s126
    %p130 = pneg %p124
    %p131 = scmp.eq.s32.totalorder %s10, 1
    %p132 = por %p130, %p131
    %p133 = scmp.ne.s32.totalorder %s125, %s128
    %p134 = scmp.eq.s32.totalorder %s10, 0
    %p135 = por %p133, %p134
    %p136 = scmp.ne.s32.totalorder %s125, %s128
    %p137 = scmp.eq.s32.totalorder %s15, 1
    %p138 = por %p136, %p137
    %p139 = scmp.ne.s32.totalorder %s128, %s129
    %p140 = scmp.eq.s32.totalorder %s15, 0
    %p141 = por %p139, %p140
    %p142 = scmp.ne.s32.totalorder %s128, %s129
    %p143 = scmp.eq.s32.totalorder %s16, 1
    %p144 = por %p142, %p143
    %p146 = scmp.ne.s32.totalorder %s129, %s145
    %p147 = scmp.eq.s32.totalorder %s16, 0
    %p148 = por %p146, %p147
    %s149 = ssub.s32 %s17, %s36
    %s150 = ssub.s32 %s18, %s32
    %s151 = sor.u32 %s149, %s150
    %p152 = scmp.eq.s32.totalorder %s151, 0
    %s154 = sadd.s32 %s153, 1
    %s155 = scalar_select %p152, %s153, %s154
    %p158 = pneg %p152
    %p159 = scmp.eq.s32.totalorder %s10, 1
    %p160 = por %p158, %p159
    %p161 = scmp.ne.s32.totalorder %s153, %s156
    %p162 = scmp.eq.s32.totalorder %s10, 0
    %p163 = por %p161, %p162
    %p164 = scmp.ne.s32.totalorder %s153, %s156
    %p165 = scmp.eq.s32.totalorder %s15, 1
    %p166 = por %p164, %p165
    %p167 = scmp.ne.s32.totalorder %s156, %s157
    %p168 = scmp.eq.s32.totalorder %s15, 0
    %p169 = por %p167, %p168
    %p170 = scmp.ne.s32.totalorder %s156, %s157
    %p171 = scmp.eq.s32.totalorder %s16, 1
    %p172 = por %p170, %p171
    %p174 = scmp.ne.s32.totalorder %s157, %s173
    %p175 = scmp.eq.s32.totalorder %s16, 0
    %p176 = por %p174, %p175
    %p177 = scmp.le.s32.totalorder 1, %s10
    %p178 = scmp.lt.s32.totalorder %s10, 3
    %p179 = pnand %p177, %p178
    %p180 = pneg %p179
    // Predicated region
    $region9: #{multi_headed_attention.8} parent=5 // pred_check
      _
    $region10: #{multi_headed_attention.8} parent=5 // pred_check_branch
      %182 = sbr.rel (%p179) target = $region12
    $region11: #{multi_headed_attention.8} parent=5 // pred_region
      %s183 = ssub.s32 %s10, 1
    $region12: #{multi_headed_attention.8} parent=5 // pred_fallthru
      _
    %p184 = scmp.lt.s32.totalorder %s10, 2
    // Predicated region
    $region13: #{multi_headed_attention.8} parent=5 // pred_check
      %p185 = pneg %p184
    $region14: #{multi_headed_attention.8} parent=5 // pred_check_branch
      %187 = sbr.rel (%p185) target = $region16
    $region15: #{multi_headed_attention.8} parent=5 // pred_region
      // Predicated region
      $region17: #{multi_headed_attention.8} parent=15 // pred_check
        %p188 = pneg %p51
      $region18: #{multi_headed_attention.8} parent=15 // pred_check_branch
        %190 = sbr.rel (%p188) target = $region20
      $region19: #{multi_headed_attention.8} parent=15 // pred_region
        %p191 = scmp.lt.s32.totalorder %s17, 1
        %s192 = scalar_select %p191, %s17, 1
        %p193 = scmp.lt.s32.totalorder %s18, 0
        %s194 = scalar_select %p193, %s18, 0
        %s195 = sadd.s32 %s194, %s192
        %s196 = smul.addr %s195, 4
        %s197 = scalar_lea.vmem %s0, %s196
      $region20: #{multi_headed_attention.8} parent=15 // pred_fallthru
        _
      // Predicated region
      $region21: #{multi_headed_attention.8} parent=15 // pred_check
        %p198 = pneg %p79
      $region22: #{multi_headed_attention.8} parent=15 // pred_check_branch
        %200 = sbr.rel (%p198) target = $region24
      $region23: #{multi_headed_attention.8} parent=15 // pred_region
        %p201 = scmp.lt.s32.totalorder %s17, 1
        %s202 = scalar_select %p201, %s17, 1
        %p203 = scmp.lt.s32.totalorder %s19, 0
        %s204 = scalar_select %p203, %s19, 0
        %s205 = sadd.s32 %s204, %s202
        %s206 = smul.addr %s205, 4
        %s207 = scalar_lea.vmem %s1, %s206
      $region24: #{multi_headed_attention.8} parent=15 // pred_fallthru
        _
      // Predicated region
      $region25: #{multi_headed_attention.8} parent=15 // pred_check
        %p208 = pneg %p107
      $region26: #{multi_headed_attention.8} parent=15 // pred_check_branch
        %210 = sbr.rel (%p208) target = $region28
      $region27: #{multi_headed_attention.8} parent=15 // pred_region
        %p211 = scmp.lt.s32.totalorder %s17, 1
        %s212 = scalar_select %p211, %s17, 1
        %p213 = scmp.lt.s32.totalorder %s19, 0
        %s214 = scalar_select %p213, %s19, 0
        %s215 = sadd.s32 %s214, %s212
        %s216 = smul.addr %s215, 4
        %s217 = scalar_lea.vmem %s2, %s216
      $region28: #{multi_headed_attention.8} parent=15 // pred_fallthru
        _
      // Predicated region
      $region29: #{multi_headed_attention.8} parent=15 // pred_check
        %p218 = pneg %p135
      $region30: #{multi_headed_attention.8} parent=15 // pred_check_branch
        %220 = sbr.rel (%p218) target = $region32
      $region31: #{multi_headed_attention.8} parent=15 // pred_region
        %p221 = scmp.lt.s32.totalorder %s17, 1
        %s222 = scalar_select %p221, %s17, 1
        %p223 = scmp.lt.s32.totalorder %s19, 0
        %s224 = scalar_select %p223, %s19, 0
        %s225 = sadd.s32 %s224, %s222
        %s226 = scalar_lea.vmem %s3, %s225
      $region32: #{multi_headed_attention.8} parent=15 // pred_fallthru
        _
    $region16: #{multi_headed_attention.8} parent=5 // pred_fallthru
      _
    %p227 = scmp.le.s32.totalorder 1, %s10
    %p228 = scmp.lt.s32.totalorder %s10, 3
    %p229 = pnand %p227, %p228
    %p230 = pneg %p229
    // Predicated region
    $region33: #{multi_headed_attention.8} parent=5 // pred_check
      _
    $region34: #{multi_headed_attention.8} parent=5 // pred_check_branch
      %232 = sbr.rel (%p229) target = $region36
    $region35: #{multi_headed_attention.8} parent=5 // pred_region
      %s233 = ssub.s32 %s10, 1
      %p234 = scmp.lt.s32.totalorder %s20, 1
      %s235 = scalar_select %p234, %s20, 1
      %p236 = scmp.lt.s32.totalorder %s21, 0
      %s237 = scalar_select %p236, %s21, 0
      %s238 = sadd.s32 %s237, %s235
      %s239 = smul.addr %s238, 4
      %s240 = scalar_lea.vmem %s0, %s239
      %p241 = pneg %p57
      %p242 = pneg %p54
      %p243 = scmp.lt.s32.totalorder %s20, 1
      %s244 = scalar_select %p243, %s20, 1
      %p245 = scmp.lt.s32.totalorder %s22, 0
      %s246 = scalar_select %p245, %s22, 0
      %s247 = sadd.s32 %s246, %s244
      %s248 = smul.addr %s247, 4
      %s249 = scalar_lea.vmem %s1, %s248
      %p250 = pneg %p85
      %p251 = pneg %p82
      %p252 = scmp.lt.s32.totalorder %s20, 1
      %s253 = scalar_select %p252, %s20, 1
      %p254 = scmp.lt.s32.totalorder %s22, 0
      %s255 = scalar_select %p254, %s22, 0
      %s256 = sadd.s32 %s255, %s253
      %s257 = smul.addr %s256, 4
      %s258 = scalar_lea.vmem %s2, %s257
      %p259 = pneg %p113
      %p260 = pneg %p110
      %p261 = scmp.lt.s32.totalorder %s20, 1
      %s262 = scalar_select %p261, %s20, 1
      %p263 = scmp.lt.s32.totalorder %s22, 0
      %s264 = scalar_select %p263, %s22, 0
      %s265 = sadd.s32 %s264, %s262
      %s266 = scalar_lea.vmem %s3, %s265
      %p267 = pneg %p141
      %p268 = pneg %p138
      %p269 = pneg %p169
      %p270 = pneg %p166
      %p271 = scmp.lt.s32.totalorder %s20, 1
      %s272 = scalar_select %p271, %s20, 1
      %p273 = scmp.lt.s32.totalorder %s21, 0
      %s274 = scalar_select %p273, %s21, 0
      %s275 = sadd.s32 %s274, %s272
      %s276 = smul.addr %s275, 4
      %s277 = scalar_lea.vmem %s4, %s276
      %p278 = scmp.lt.s32.totalorder %s20, 1
      %s279 = scalar_select %p278, %s20, 1
      %p280 = scmp.lt.s32.totalorder %s21, 0
      %s281 = scalar_select %p280, %s21, 0
      %s282 = sadd.s32 %s281, %s279
      %s283 = smul.addr %s282, 4
      %s284 = scalar_lea.vmem %s0, %s283
      %p285 = scmp.lt.s32.totalorder %s20, 1
      %s286 = scalar_select %p285, %s20, 1
      %p287 = scmp.lt.s32.totalorder %s22, 0
      %s288 = scalar_select %p287, %s22, 0
      %s289 = sadd.s32 %s288, %s286
      %s290 = smul.addr %s289, 4
      %s291 = scalar_lea.vmem %s1, %s290
      %p292 = scmp.lt.s32.totalorder %s20, 1
      %s293 = scalar_select %p292, %s20, 1
      %p294 = scmp.lt.s32.totalorder %s22, 0
      %s295 = scalar_select %p294, %s22, 0
      %s296 = sadd.s32 %s295, %s293
      %s297 = smul.addr %s296, 4
      %s298 = scalar_lea.vmem %s2, %s297
      %p299 = scmp.lt.s32.totalorder %s20, 1
      %s300 = scalar_select %p299, %s20, 1
      %p301 = scmp.lt.s32.totalorder %s22, 0
      %s302 = scalar_select %p301, %s22, 0
      %s303 = sadd.s32 %s302, %s300
      %s304 = scalar_lea.vmem %s3, %s303
      %p305 = scmp.lt.s32.totalorder %s20, 1
      %s306 = scalar_select %p305, %s20, 1
      %p307 = scmp.lt.s32.totalorder %s21, 0
      %s308 = scalar_select %p307, %s21, 0
      %s309 = sadd.s32 %s308, %s306
      %s310 = smul.addr %s309, 4
      %s311 = scalar_lea.vmem %s4, %s310
      %p313 = scmp.eq.s32.totalorder %s22, 0
      // Predicated region
      $region37: #{multi_headed_attention.8} parent=35 // pred_check
        %p314 = pneg %p313
      $region38: #{multi_headed_attention.8} parent=35 // pred_check_branch
        %316 = sbr.rel (%p314) target = $region40
      $region39: #{multi_headed_attention.8} parent=35 // pred_region
        %vm317 = vcmask 31744
        %318 = vst.msk [vmem:[#allocation2] sm:$0xff] %vm317, -inf
        %vm319 = vcmask 261120
        %320 = vst.msk [vmem:[#allocation3] sm:$0xff] %vm319, 0.0
        %321 = vst.msk [vmem:[#allocation4] sm:$0xff] %vm319, 0.0
      $region40: #{multi_headed_attention.8} parent=35 // pred_fallthru
        _
      %v322 = vld [vmem:[%s304] sm:$0x1]
      %v323 = vld [vmem:[%s284] sm:$0xf]
      %v324 = vld [vmem:[%s291] sm:$0xf]
      %v325 = vld [vmem:[%s298] sm:$0xf]
      %v327 = vlaneseq
      %v328 = vshrl.u32 %v327, 7
      %v329 = vsub.s32 0, %v328
      %v330 = vrot.slane %v322, %v329
      %vm332 = vcmask 64512
      %v334 = vsel %vm332, %v323, 0
      %v337 = vsel %vm332, %v324, 0
      %339 = vmatprep.subr.bf16.mxu0 0
      %340 = vmatpush1.bf16.xpose.msra.mxu0 0
      %341 = vmatprep.subr.bf16.mxu0 0
      %342 = vmatpush1.bf16.xpose.msra.mxu0 0
      %343 = vmatprep.subr.bf16.mxu0 0
      %344 = vmatpush1.bf16.xpose.msra.mxu0 0
      %345 = vmatprep.subr.bf16.mxu0 0
      %346 = vmatpush1.bf16.xpose.msra.mxu0 0
      %347 = vmatprep.subr.bf16.mxu0 0
      %348 = vmatpush1.bf16.xpose.msra.mxu0 0
      %349 = vmatprep.subr.bf16.mxu0 0
      %350 = vmatpush1.bf16.xpose.msra.mxu0 0
      %351 = vmatprep.subr.bf16.mxu0 0
      %352 = vmatpush1.bf16.xpose.msra.mxu0 0
      %353 = vmatprep.subr.bf16.mxu0 0
      %354 = vmatpush1.bf16.xpose.msra.mxu0 %v337
      %355 = vmatprep.subr.bf16.mxu0 0
      %356 = vmatpush2.bf16.xpose.msra.mxu0 0
      %357 = vmatprep.subr.bf16.mxu0 0
      %358 = vmatpush2.bf16.xpose.msra.mxu0 0
      %359 = vmatprep.subr.bf16.mxu0 0
      %360 = vmatpush2.bf16.xpose.msra.mxu0 0
      %361 = vmatprep.subr.bf16.mxu0 0
      %362 = vmatpush2.bf16.xpose.msra.mxu0 0
      %363 = vmatprep.subr.bf16.mxu0 0
      %364 = vmatpush2.bf16.xpose.msra.mxu0 0
      %365 = vmatprep.subr.bf16.mxu0 0
      %366 = vmatpush2.bf16.xpose.msra.mxu0 0
      %367 = vmatprep.subr.bf16.mxu0 0
      %368 = vmatpush2.bf16.xpose.msra.mxu0 0
      %369 = vmatprep.subr.bf16.mxu0 0
      %370 = vmatpush2.bf16.xpose.msra.mxu0 0
      %371 = vmatprep.mubr.bf16.mxu0 0
      %372 = vmatmul.mubr.bf16.gmra.mxu0 %v334
      %v373 = vpop.f32.mrf.mxu0
      %v374 = vadd.f32 %v330, %v373
      %v375 = vpop.f32.mrf.mxu0
      %v376 = vpop.f32.mrf.mxu0
      %v377 = vpop.f32.mrf.mxu0
      %378 = vdwg.mxu0
      %v379 = vld [vmem:[#allocation2] sm:$0xff]
      %v380 = vsel %vm332, %v374, -inf
      %381 = vmax.xlane.f32.xlu0 %v380
      %v382 = vpop.xlane.xlu0 %381
      %v383 = vmax.f32 %v379, %v382
      %v384 = vsub.f32 %v379, %v383
      %v385 = vmul.f32 %v384, 1.442695
      %v386 = vpow.pop %v385
      %388 = vset.pattern.permute.xlu0 0
      %389 = vperm.xlu0 %388, %v383
      %v390 = vpop.permute.xlu0 %389
      %v392 = vsub.f32 %v374, %v390
      %v393 = vmul.f32 %v392, 1.442695
      %v394 = vpow.pop %v393
      %v395 = vld [vmem:[#allocation3] sm:$0xff]
      %397 = vset.pattern.permute.xlu0 0
      %398 = vperm.xlu0 %397, %v386
      %v399 = vpop.permute.xlu0 %398
      %v401 = vmul.f32 %v399, %v395
      %v402 = vsel %vm332, %v394, 0.0
      %403 = vadd.xlane.f32.xlu0 %v402
      %v404 = vpop.xlane.xlu0 %403
      %v405 = vadd.f32 %v401, %v404
      %406 = vst.msk [vmem:[#allocation3] sm:$0xff] %vm332, %v405
      %v407 = vld [vmem:[#allocation4] sm:$0xff]
      %v408 = vmul.f32 %v399, %v407
      %v409 = vpack.c.bf16 %v394, %v394
      %v411 = vsel %vm332, %v409, 0
      %vm413 = vcmask 1043456
      %v415 = vsel %vm413, %v325, 0
      %417 = vmatprep.subr.bf16.mxu0 0
      %418 = vmatpush1.bf16.msra.mxu0 0
      %419 = vmatprep.subr.bf16.mxu0 0
      %420 = vmatpush1.bf16.msra.mxu0 0
      %421 = vmatprep.subr.bf16.mxu0 0
      %422 = vmatpush1.bf16.msra.mxu0 0
      %423 = vmatprep.subr.bf16.mxu0 0
      %424 = vmatpush1.bf16.msra.mxu0 0
      %425 = vmatprep.subr.bf16.mxu0 0
      %426 = vmatpush1.bf16.msra.mxu0 0
      %427 = vmatprep.subr.bf16.mxu0 0
      %428 = vmatpush1.bf16.msra.mxu0 0
      %429 = vmatprep.subr.bf16.mxu0 0
      %430 = vmatpush1.bf16.msra.mxu0 0
      %431 = vmatprep.subr.bf16.mxu0 0
      %432 = vmatpush1.bf16.msra.mxu0 %v415
      %433 = vmatprep.subr.bf16.mxu0 0
      %434 = vmatpush2.bf16.msra.mxu0 0
      %435 = vmatprep.subr.bf16.mxu0 0
      %436 = vmatpush2.bf16.msra.mxu0 0
      %437 = vmatprep.subr.bf16.mxu0 0
      %438 = vmatpush2.bf16.msra.mxu0 0
      %439 = vmatprep.subr.bf16.mxu0 0
      %440 = vmatpush2.bf16.msra.mxu0 0
      %441 = vmatprep.subr.bf16.mxu0 0
      %442 = vmatpush2.bf16.msra.mxu0 0
      %443 = vmatprep.subr.bf16.mxu0 0
      %444 = vmatpush2.bf16.msra.mxu0 0
      %445 = vmatprep.subr.bf16.mxu0 0
      %446 = vmatpush2.bf16.msra.mxu0 0
      %447 = vmatprep.subr.bf16.mxu0 0
      %448 = vmatpush2.bf16.msra.mxu0 0
      %449 = vmatprep.mubr.bf16.mxu0 0
      %450 = vmatmul.mubr.bf16.gmra.mxu0 %v411
      %v451 = vpop.f32.mrf.mxu0
      %v452 = vadd.f32 0.0, %v451
      %v453 = vpop.f32.mrf.mxu0
      %v454 = vpop.f32.mrf.mxu0
      %v455 = vpop.f32.mrf.mxu0
      %456 = vdwg.mxu0
      %v457 = vadd.f32 %v408, %v452
      %458 = vst.msk [vmem:[#allocation4] sm:$0xff] %vm332, %v457
      %vm459 = vcmask 7168
      %460 = vst.msk [vmem:[#allocation2] sm:$0xff] %vm459, %v383
      %v461 = vld [vmem:[%s284] sm:$0xf]
      %v462 = vld [vmem:[%s291] sm:$0xf]
      %v463 = vld [vmem:[%s298] sm:$0xf]
      %v465 = vunpack.c.l.b16 %v461
      %v466 = vpack.c.b16 %v465, %v465
      %467 = vrot.lane.b32.xlu0 %v466, 120
      %v468 = vpop.permute.xlu0 %467
      %v470 = vunpack.c.l.b16 %v462
      %v471 = vpack.c.b16 %v470, %v470
      %472 = vrot.lane.b32.xlu0 %v471, 120
      %v473 = vpop.permute.xlu0 %472
      %v475 = vsel %vm332, %v468, 0
      %v478 = vsel %vm332, %v473, 0
      %480 = vmatprep.subr.bf16.mxu0 0
      %481 = vmatpush1.bf16.xpose.msra.mxu0 0
      %482 = vmatprep.subr.bf16.mxu0 0
      %483 = vmatpush1.bf16.xpose.msra.mxu0 0
      %484 = vmatprep.subr.bf16.mxu0 0
      %485 = vmatpush1.bf16.xpose.msra.mxu0 0
      %486 = vmatprep.subr.bf16.mxu0 0
      %487 = vmatpush1.bf16.xpose.msra.mxu0 0
      %488 = vmatprep.subr.bf16.mxu0 0
      %489 = vmatpush1.bf16.xpose.msra.mxu0 0
      %490 = vmatprep.subr.bf16.mxu0 0
      %491 = vmatpush1.bf16.xpose.msra.mxu0 0
      %492 = vmatprep.subr.bf16.mxu0 0
      %493 = vmatpush1.bf16.xpose.msra.mxu0 0
      %494 = vmatprep.subr.bf16.mxu0 0
      %495 = vmatpush1.bf16.xpose.msra.mxu0 %v478
      %496 = vmatprep.subr.bf16.mxu0 0
      %497 = vmatpush2.bf16.xpose.msra.mxu0 0
      %498 = vmatprep.subr.bf16.mxu0 0
      %499 = vmatpush2.bf16.xpose.msra.mxu0 0
      %500 = vmatprep.subr.bf16.mxu0 0
      %501 = vmatpush2.bf16.xpose.msra.mxu0 0
      %502 = vmatprep.subr.bf16.mxu0 0
      %503 = vmatpush2.bf16.xpose.msra.mxu0 0
      %504 = vmatprep.subr.bf16.mxu0 0
      %505 = vmatpush2.bf16.xpose.msra.mxu0 0
      %506 = vmatprep.subr.bf16.mxu0 0
      %507 = vmatpush2.bf16.xpose.msra.mxu0 0
      %508 = vmatprep.subr.bf16.mxu0 0
      %509 = vmatpush2.bf16.xpose.msra.mxu0 0
      %510 = vmatprep.subr.bf16.mxu0 0
      %511 = vmatpush2.bf16.xpose.msra.mxu0 0
      %512 = vmatprep.mubr.bf16.mxu0 0
      %513 = vmatmul.mubr.bf16.gmra.mxu0 %v475
      %v514 = vpop.f32.mrf.mxu0
      %v515 = vadd.f32 %v330, %v514
      %v516 = vpop.f32.mrf.mxu0
      %v517 = vpop.f32.mrf.mxu0
      %v518 = vpop.f32.mrf.mxu0
      %519 = vdwg.mxu0
      %v520 = vld [vmem:[#allocation2] sm:$0xff]
      %v521 = vsel %vm332, %v515, -inf
      %522 = vmax.xlane.f32.xlu0 %v521
      %v523 = vpop.xlane.xlu0 %522
      %v524 = vmax.f32 %v520, %v523
      %v525 = vsub.f32 %v520, %v524
      %v526 = vmul.f32 %v525, 1.442695
      %v527 = vpow.pop %v526
      %529 = vset.pattern.permute.xlu0 1
      %530 = vperm.xlu0 %529, %v524
      %v531 = vpop.permute.xlu0 %530
      %v533 = vsub.f32 %v515, %v531
      %v534 = vmul.f32 %v533, 1.442695
      %v535 = vpow.pop %v534
      %v536 = vld [vmem:[#allocation3] sm:$0xff]
      %538 = vset.pattern.permute.xlu0 1
      %539 = vperm.xlu0 %538, %v527
      %v540 = vpop.permute.xlu0 %539
      %v542 = vmul.f32 %v540, %v536
      %v543 = vsel %vm332, %v535, 0.0
      %544 = vadd.xlane.f32.xlu0 %v543
      %v545 = vpop.xlane.xlu0 %544
      %v546 = vadd.f32 %v542, %v545
      %vm547 = vcmask 130112
      %548 = vst.msk [vmem:[#allocation3] sm:$0xff] %vm547, %v546
      %v549 = vld [vmem:[#allocation4] sm:$0xff]
      %v550 = vmul.f32 %v540, %v549
      %v551 = vpack.c.bf16 %v535, %v535
      %v553 = vunpack.c.l.b16 %v463
      %v554 = vpack.c.b16 %v553, %v553
      %555 = vrot.lane.b32.xlu0 %v554, 120
      %v556 = vpop.permute.xlu0 %555
      %v558 = vsel %vm332, %v551, 0
      %v561 = vsel %vm413, %v556, 0
      %563 = vmatprep.subr.bf16.mxu0 0
      %564 = vmatpush1.bf16.msra.mxu0 0
      %565 = vmatprep.subr.bf16.mxu0 0
      %566 = vmatpush1.bf16.msra.mxu0 0
      %567 = vmatprep.subr.bf16.mxu0 0
      %568 = vmatpush1.bf16.msra.mxu0 0
      %569 = vmatprep.subr.bf16.mxu0 0
      %570 = vmatpush1.bf16.msra.mxu0 0
      %571 = vmatprep.subr.bf16.mxu0 0
      %572 = vmatpush1.bf16.msra.mxu0 0
      %573 = vmatprep.subr.bf16.mxu0 0
      %574 = vmatpush1.bf16.msra.mxu0 0
      %575 = vmatprep.subr.bf16.mxu0 0
      %576 = vmatpush1.bf16.msra.mxu0 0
      %577 = vmatprep.subr.bf16.mxu0 0
      %578 = vmatpush1.bf16.msra.mxu0 %v561
      %579 = vmatprep.subr.bf16.mxu0 0
      %580 = vmatpush2.bf16.msra.mxu0 0
      %581 = vmatprep.subr.bf16.mxu0 0
      %582 = vmatpush2.bf16.msra.mxu0 0
      %583 = vmatprep.subr.bf16.mxu0 0
      %584 = vmatpush2.bf16.msra.mxu0 0
      %585 = vmatprep.subr.bf16.mxu0 0
      %586 = vmatpush2.bf16.msra.mxu0 0
      %587 = vmatprep.subr.bf16.mxu0 0
      %588 = vmatpush2.bf16.msra.mxu0 0
      %589 = vmatprep.subr.bf16.mxu0 0
      %590 = vmatpush2.bf16.msra.mxu0 0
      %591 = vmatprep.subr.bf16.mxu0 0
      %592 = vmatpush2.bf16.msra.mxu0 0
      %593 = vmatprep.subr.bf16.mxu0 0
      %594 = vmatpush2.bf16.msra.mxu0 0
      %595 = vmatprep.mubr.bf16.mxu0 0
      %596 = vmatmul.mubr.bf16.gmra.mxu0 %v558
      %v597 = vpop.f32.mrf.mxu0
      %v598 = vadd.f32 0.0, %v597
      %v599 = vpop.f32.mrf.mxu0
      %v600 = vpop.f32.mrf.mxu0
      %v601 = vpop.f32.mrf.mxu0
      %602 = vdwg.mxu0
      %604 = vrot.lane.b32.xlu0 %v598, 8
      %v605 = vpop.permute.xlu0 %604
      %v607 = vadd.f32 %v550, %v605
      %608 = vst.msk [vmem:[#allocation4] sm:$0xff] %vm547, %v607
      %vm609 = vcmask 15368
      %610 = vst.msk [vmem:[#allocation2] sm:$0xff] %vm609, %v524
      %v611 = vld [vmem:[%s284] sm:$0xf]
      %v612 = vld [vmem:[%s291] sm:$0xf]
      %v613 = vld [vmem:[%s298] sm:$0xf]
      %v615 = vunpack.c.l.b16 %v611
      %v616 = vpack.c.b16 %v615, %v615
      %617 = vrot.lane.b32.xlu0 %v616, 112
      %v618 = vpop.permute.xlu0 %617
      %v620 = vunpack.c.l.b16 %v612
      %v621 = vpack.c.b16 %v620, %v620
      %622 = vrot.lane.b32.xlu0 %v621, 112
      %v623 = vpop.permute.xlu0 %622
      %v625 = vsel %vm332, %v618, 0
      %v628 = vsel %vm332, %v623, 0
      %630 = vmatprep.subr.bf16.mxu0 0
      %631 = vmatpush1.bf16.xpose.msra.mxu0 0
      %632 = vmatprep.subr.bf16.mxu0 0
      %633 = vmatpush1.bf16.xpose.msra.mxu0 0
      %634 = vmatprep.subr.bf16.mxu0 0
      %635 = vmatpush1.bf16.xpose.msra.mxu0 0
      %636 = vmatprep.subr.bf16.mxu0 0
      %637 = vmatpush1.bf16.xpose.msra.mxu0 0
      %638 = vmatprep.subr.bf16.mxu0 0
      %639 = vmatpush1.bf16.xpose.msra.mxu0 0
      %640 = vmatprep.subr.bf16.mxu0 0
      %641 = vmatpush1.bf16.xpose.msra.mxu0 0
      %642 = vmatprep.subr.bf16.mxu0 0
      %643 = vmatpush1.bf16.xpose.msra.mxu0 0
      %644 = vmatprep.subr.bf16.mxu0 0
      %645 = vmatpush1.bf16.xpose.msra.mxu0 %v628
      %646 = vmatprep.subr.bf16.mxu0 0
      %647 = vmatpush2.bf16.xpose.msra.mxu0 0
      %648 = vmatprep.subr.bf16.mxu0 0
      %649 = vmatpush2.bf16.xpose.msra.mxu0 0
      %650 = vmatprep.subr.bf16.mxu0 0
      %651 = vmatpush2.bf16.xpose.msra.mxu0 0
      %652 = vmatprep.subr.bf16.mxu0 0
      %653 = vmatpush2.bf16.xpose.msra.mxu0 0
      %654 = vmatprep.subr.bf16.mxu0 0
      %655 = vmatpush2.bf16.xpose.msra.mxu0 0
      %656 = vmatprep.subr.bf16.mxu0 0
      %657 = vmatpush2.bf16.xpose.msra.mxu0 0
      %658 = vmatprep.subr.bf16.mxu0 0
      %659 = vmatpush2.bf16.xpose.msra.mxu0 0
      %660 = vmatprep.subr.bf16.mxu0 0
      %661 = vmatpush2.bf16.xpose.msra.mxu0 0
      %662 = vmatprep.mubr.bf16.mxu0 0
      %663 = vmatmul.mubr.bf16.gmra.mxu0 %v625
      %v664 = vpop.f32.mrf.mxu0
      %v665 = vadd.f32 %v330, %v664
      %v666 = vpop.f32.mrf.mxu0
      %v667 = vpop.f32.mrf.mxu0
      %v668 = vpop.f32.mrf.mxu0
      %669 = vdwg.mxu0
      %v670 = vld [vmem:[#allocation2] sm:$0xff]
      %v671 = vsel %vm332, %v665, -inf
      %672 = vmax.xlane.f32.xlu0 %v671
      %v673 = vpop.xlane.xlu0 %672
      %v674 = vmax.f32 %v670, %v673
      %v675 = vsub.f32 %v670, %v674
      %v676 = vmul.f32 %v675, 1.442695
      %v677 = vpow.pop %v676
      %679 = vset.pattern.permute.xlu0 2
      %680 = vperm.xlu0 %679, %v674
      %v681 = vpop.permute.xlu0 %680
      %v683 = vsub.f32 %v665, %v681
      %v684 = vmul.f32 %v683, 1.442695
      %v685 = vpow.pop %v684
      %v686 = vld [vmem:[#allocation3] sm:$0xff]
      %688 = vset.pattern.permute.xlu0 2
      %689 = vperm.xlu0 %688, %v677
      %v690 = vpop.permute.xlu0 %689
      %v692 = vmul.f32 %v690, %v686
      %v693 = vsel %vm332, %v685, 0.0
      %694 = vadd.xlane.f32.xlu0 %v693
      %v695 = vpop.xlane.xlu0 %694
      %v696 = vadd.f32 %v692, %v695
      %vm697 = vcmask 195712
      %698 = vst.msk [vmem:[#allocation3] sm:$0xff] %vm697, %v696
      %v699 = vld [vmem:[#allocation4] sm:$0xff]
      %v700 = vmul.f32 %v690, %v699
      %v701 = vpack.c.bf16 %v685, %v685
      %v703 = vunpack.c.l.b16 %v613
      %v704 = vpack.c.b16 %v703, %v703
      %705 = vrot.lane.b32.xlu0 %v704, 112
      %v706 = vpop.permute.xlu0 %705
      %v708 = vsel %vm332, %v701, 0
      %v711 = vsel %vm413, %v706, 0
      %713 = vmatprep.subr.bf16.mxu0 0
      %714 = vmatpush1.bf16.msra.mxu0 0
      %715 = vmatprep.subr.bf16.mxu0 0
      %716 = vmatpush1.bf16.msra.mxu0 0
      %717 = vmatprep.subr.bf16.mxu0 0
      %718 = vmatpush1.bf16.msra.mxu0 0
      %719 = vmatprep.subr.bf16.mxu0 0
      %720 = vmatpush1.bf16.msra.mxu0 0
      %721 = vmatprep.subr.bf16.mxu0 0
      %722 = vmatpush1.bf16.msra.mxu0 0
      %723 = vmatprep.subr.bf16.mxu0 0
      %724 = vmatpush1.bf16.msra.mxu0 0
      %725 = vmatprep.subr.bf16.mxu0 0
      %726 = vmatpush1.bf16.msra.mxu0 0
      %727 = vmatprep.subr.bf16.mxu0 0
      %728 = vmatpush1.bf16.msra.mxu0 %v711
      %729 = vmatprep.subr.bf16.mxu0 0
      %730 = vmatpush2.bf16.msra.mxu0 0
      %731 = vmatprep.subr.bf16.mxu0 0
      %732 = vmatpush2.bf16.msra.mxu0 0
      %733 = vmatprep.subr.bf16.mxu0 0
      %734 = vmatpush2.bf16.msra.mxu0 0
      %735 = vmatprep.subr.bf16.mxu0 0
      %736 = vmatpush2.bf16.msra.mxu0 0
      %737 = vmatprep.subr.bf16.mxu0 0
      %738 = vmatpush2.bf16.msra.mxu0 0
      %739 = vmatprep.subr.bf16.mxu0 0
      %740 = vmatpush2.bf16.msra.mxu0 0
      %741 = vmatprep.subr.bf16.mxu0 0
      %742 = vmatpush2.bf16.msra.mxu0 0
      %743 = vmatprep.subr.bf16.mxu0 0
      %744 = vmatpush2.bf16.msra.mxu0 0
      %745 = vmatprep.mubr.bf16.mxu0 0
      %746 = vmatmul.mubr.bf16.gmra.mxu0 %v708
      %v747 = vpop.f32.mrf.mxu0
      %v748 = vadd.f32 0.0, %v747
      %v749 = vpop.f32.mrf.mxu0
      %v750 = vpop.f32.mrf.mxu0
      %v751 = vpop.f32.mrf.mxu0
      %752 = vdwg.mxu0
      %754 = vrot.lane.b32.xlu0 %v748, 16
      %v755 = vpop.permute.xlu0 %754
      %v757 = vadd.f32 %v700, %v755
      %758 = vst.msk [vmem:[#allocation4] sm:$0xff] %vm697, %v757
      %vm759 = vcmask 23568
      %760 = vst.msk [vmem:[#allocation2] sm:$0xff] %vm759, %v674
      %v761 = vld [vmem:[%s284] sm:$0xf]
      %v762 = vld [vmem:[%s291] sm:$0xf]
      %v763 = vld [vmem:[%s298] sm:$0xf]
      %v765 = vunpack.c.l.b16 %v761
      %v766 = vpack.c.b16 %v765, %v765
      %767 = vrot.lane.b32.xlu0 %v766, 104
      %v768 = vpop.permute.xlu0 %767
      %v770 = vunpack.c.l.b16 %v762
      %v771 = vpack.c.b16 %v770, %v770
      %772 = vrot.lane.b32.xlu0 %v771, 104
      %v773 = vpop.permute.xlu0 %772
      %v775 = vsel %vm332, %v768, 0
      %v778 = vsel %vm332, %v773, 0
      %780 = vmatprep.subr.bf16.mxu0 0
      %781 = vmatpush1.bf16.xpose.msra.mxu0 0
      %782 = vmatprep.subr.bf16.mxu0 0
      %783 = vmatpush1.bf16.xpose.msra.mxu0 0
      %784 = vmatprep.subr.bf16.mxu0 0
      %785 = vmatpush1.bf16.xpose.msra.mxu0 0
      %786 = vmatprep.subr.bf16.mxu0 0
      %787 = vmatpush1.bf16.xpose.msra.mxu0 0
      %788 = vmatprep.subr.bf16.mxu0 0
      %789 = vmatpush1.bf16.xpose.msra.mxu0 0
      %790 = vmatprep.subr.bf16.mxu0 0
      %791 = vmatpush1.bf16.xpose.msra.mxu0 0
      %792 = vmatprep.subr.bf16.mxu0 0
      %793 = vmatpush1.bf16.xpose.msra.mxu0 0
      %794 = vmatprep.subr.bf16.mxu0 0
      %795 = vmatpush1.bf16.xpose.msra.mxu0 %v778
      %796 = vmatprep.subr.bf16.mxu0 0
      %797 = vmatpush2.bf16.xpose.msra.mxu0 0
      %798 = vmatprep.subr.bf16.mxu0 0
      %799 = vmatpush2.bf16.xpose.msra.mxu0 0
      %800 = vmatprep.subr.bf16.mxu0 0
      %801 = vmatpush2.bf16.xpose.msra.mxu0 0
      %802 = vmatprep.subr.bf16.mxu0 0
      %803 = vmatpush2.bf16.xpose.msra.mxu0 0
      %804 = vmatprep.subr.bf16.mxu0 0
      %805 = vmatpush2.bf16.xpose.msra.mxu0 0
      %806 = vmatprep.subr.bf16.mxu0 0
      %807 = vmatpush2.bf16.xpose.msra.mxu0 0
      %808 = vmatprep.subr.bf16.mxu0 0
      %809 = vmatpush2.bf16.xpose.msra.mxu0 0
      %810 = vmatprep.subr.bf16.mxu0 0
      %811 = vmatpush2.bf16.xpose.msra.mxu0 0
      %812 = vmatprep.mubr.bf16.mxu0 0
      %813 = vmatmul.mubr.bf16.gmra.mxu0 %v775
      %v814 = vpop.f32.mrf.mxu0
      %v815 = vadd.f32 %v330, %v814
      %v816 = vpop.f32.mrf.mxu0
      %v817 = vpop.f32.mrf.mxu0
      %v818 = vpop.f32.mrf.mxu0
      %819 = vdwg.mxu0
      %v820 = vld [vmem:[#allocation2] sm:$0xff]
      %v821 = vsel %vm332, %v815, -inf
      %822 = vmax.xlane.f32.xlu0 %v821
      %v823 = vpop.xlane.xlu0 %822
      %v824 = vmax.f32 %v820, %v823
      %v825 = vsub.f32 %v820, %v824
      %v826 = vmul.f32 %v825, 1.442695
      %v827 = vpow.pop %v826
      %829 = vset.pattern.permute.xlu0 3
      %830 = vperm.xlu0 %829, %v824
      %v831 = vpop.permute.xlu0 %830
      %v833 = vsub.f32 %v815, %v831
      %v834 = vmul.f32 %v833, 1.442695
      %v835 = vpow.pop %v834
      %v836 = vld [vmem:[#allocation3] sm:$0xff]
      %838 = vset.pattern.permute.xlu0 3
      %839 = vperm.xlu0 %838, %v827
      %v840 = vpop.permute.xlu0 %839
      %v842 = vmul.f32 %v840, %v836
      %v843 = vsel %vm332, %v835, 0.0
      %844 = vadd.xlane.f32.xlu0 %v843
      %v845 = vpop.xlane.xlu0 %844
      %v846 = vadd.f32 %v842, %v845
      %vm847 = vcmask 261312
      %848 = vst.msk [vmem:[#allocation3] sm:$0xff] %vm847, %v846
      %v849 = vld [vmem:[#allocation4] sm:$0xff]
      %v850 = vmul.f32 %v840, %v849
      %v851 = vpack.c.bf16 %v835, %v835
      %v853 = vunpack.c.l.b16 %v763
      %v854 = vpack.c.b16 %v853, %v853
      %855 = vrot.lane.b32.xlu0 %v854, 104
      %v856 = vpop.permute.xlu0 %855
      %v858 = vsel %vm332, %v851, 0
      %v861 = vsel %vm413, %v856, 0
      %863 = vmatprep.subr.bf16.mxu0 0
      %864 = vmatpush1.bf16.msra.mxu0 0
      %865 = vmatprep.subr.bf16.mxu0 0
      %866 = vmatpush1.bf16.msra.mxu0 0
      %867 = vmatprep.subr.bf16.mxu0 0
      %868 = vmatpush1.bf16.msra.mxu0 0
      %869 = vmatprep.subr.bf16.mxu0 0
      %870 = vmatpush1.bf16.msra.mxu0 0
      %871 = vmatprep.subr.bf16.mxu0 0
      %872 = vmatpush1.bf16.msra.mxu0 0
      %873 = vmatprep.subr.bf16.mxu0 0
      %874 = vmatpush1.bf16.msra.mxu0 0
      %875 = vmatprep.subr.bf16.mxu0 0
      %876 = vmatpush1.bf16.msra.mxu0 0
      %877 = vmatprep.subr.bf16.mxu0 0
      %878 = vmatpush1.bf16.msra.mxu0 %v861
      %879 = vmatprep.subr.bf16.mxu0 0
      %880 = vmatpush2.bf16.msra.mxu0 0
      %881 = vmatprep.subr.bf16.mxu0 0
      %882 = vmatpush2.bf16.msra.mxu0 0
      %883 = vmatprep.subr.bf16.mxu0 0
      %884 = vmatpush2.bf16.msra.mxu0 0
      %885 = vmatprep.subr.bf16.mxu0 0
      %886 = vmatpush2.bf16.msra.mxu0 0
      %887 = vmatprep.subr.bf16.mxu0 0
      %888 = vmatpush2.bf16.msra.mxu0 0
      %889 = vmatprep.subr.bf16.mxu0 0
      %890 = vmatpush2.bf16.msra.mxu0 0
      %891 = vmatprep.subr.bf16.mxu0 0
      %892 = vmatpush2.bf16.msra.mxu0 0
      %893 = vmatprep.subr.bf16.mxu0 0
      %894 = vmatpush2.bf16.msra.mxu0 0
      %895 = vmatprep.mubr.bf16.mxu0 0
      %896 = vmatmul.mubr.bf16.gmra.mxu0 %v858
      %v897 = vpop.f32.mrf.mxu0
      %v898 = vadd.f32 0.0, %v897
      %v899 = vpop.f32.mrf.mxu0
      %v900 = vpop.f32.mrf.mxu0
      %v901 = vpop.f32.mrf.mxu0
      %902 = vdwg.mxu0
      %904 = vrot.lane.b32.xlu0 %v898, 24
      %v905 = vpop.permute.xlu0 %904
      %v907 = vadd.f32 %v850, %v905
      %908 = vst.msk [vmem:[#allocation4] sm:$0xff] %vm847, %v907
      %vm909 = vcmask 31768
      %910 = vst.msk [vmem:[#allocation2] sm:$0xff] %vm909, %v824
      // Predicated region
      $region41: #{multi_headed_attention.8} parent=35 // pred_check
        %p911 = pneg %p313
      $region42: #{multi_headed_attention.8} parent=35 // pred_check_branch
        %913 = sbr.rel (%p911) target = $region44
      $region43: #{multi_headed_attention.8} parent=35 // pred_region
        %v914 = vld [vmem:[#allocation3] sm:$0xff]
        %v915 = vrcp.pop %v914
        %v916 = vld [vmem:[#allocation4] sm:$0xff]
        %v917 = vmul.f32 %v916, %v915
        %v918 = vpack.c.bf16 %v917, %v917
        %vm919 = vcmask 257024
        %920 = vst.msk [vmem:[%s311] sm:$0xf] %vm919, %v918
      $region44: #{multi_headed_attention.8} parent=35 // pred_fallthru
        _
      %p921 = scmp.lt.s32.totalorder %s20, 1
      %s922 = scalar_select %p921, %s20, 1
      %p923 = scmp.lt.s32.totalorder %s21, 0
      %s924 = scalar_select %p923, %s21, 0
      %s925 = sadd.s32 %s924, %s922
      %s926 = smul.addr %s925, 4
      %s927 = scalar_lea.vmem %s4, %s926
      // Predicated region
      $region45: #{multi_headed_attention.8} parent=35 // pred_check
        %p928 = pneg %p166
      $region46: #{multi_headed_attention.8} parent=35 // pred_check_branch
        %930 = sbr.rel (%p928) target = $region48
      $region47: #{multi_headed_attention.8} parent=35 // pred_region
        _
      $region48: #{multi_headed_attention.8} parent=35 // pred_fallthru
        _
    $region36: #{multi_headed_attention.8} parent=5 // pred_fallthru
      _
    %p931 = scmp.le.s32.totalorder 2, %s10
    // Predicated region
    $region49: #{multi_headed_attention.8} parent=5 // pred_check
      %p932 = pneg %p931
    $region50: #{multi_headed_attention.8} parent=5 // pred_check_branch
      %934 = sbr.rel (%p932) target = $region52
    $region51: #{multi_headed_attention.8} parent=5 // pred_region
      %s935 = ssub.s32 %s10, 2
      // Predicated region
      $region53: #{multi_headed_attention.8} parent=51 // pred_check
        %p936 = pneg %p172
      $region54: #{multi_headed_attention.8} parent=51 // pred_check_branch
        %938 = sbr.rel (%p936) target = $region56
      $region55: #{multi_headed_attention.8} parent=51 // pred_region
        %p939 = scmp.lt.s32.totalorder %s23, 1
        %s940 = scalar_select %p939, %s23, 1
        %p941 = scmp.lt.s32.totalorder %s24, 0
        %s942 = scalar_select %p941, %s24, 0
        %s943 = sadd.s32 %s942, %s940
        %s944 = smul.addr %s943, 4
        %s945 = scalar_lea.vmem %s4, %s944
      $region56: #{multi_headed_attention.8} parent=51 // pred_fallthru
        _
    $region52: #{multi_headed_attention.8} parent=5 // pred_fallthru
      _
  $region6: #{multi_headed_attention.8} parent=0 // loop_footer
    %s14 = sadd.s32 1, %s10
  $region7: #{multi_headed_attention.8} parent=0 // loop_footer_branch
    %9 = sbr.rel target = $region3
  $region8: #{multi_headed_attention.8} parent=0 // loop_exit
    _

</llo_original>
